<compile_context>
chip_gen: v5e
topology: v5e:2x2
jax: 0.10.0
libtpu: 0.0.40
codegen_flags: <defaults>
</compile_context>

<pallas_src>
import math

import jax
import jax.numpy as jnp
from jax.experimental import pallas as pl
from jax.experimental.pallas import tpu as pltpu

_LANE = 128
_SUBLANE = 8


def _round_up(n, m):
    return ((n + m - 1) // m) * m


def _cdiv(a, b):
    return -(-a // b)


# ----------------------------------- kernel ---------------------------------

def _mlp_kernel(x_ref,
                w1_ref, b1_ref,
                w2_ref, b2_ref,
                w3_ref, b3_ref,
                w4_ref, b4_ref,
                w5_ref, b5_ref,
                o_ref):
    """Fused 5-layer MLP (Linear+ReLU x4, then Linear) on one batch tile.

    Matmul operands are bf16 (MXU); accumulation and biases stay f32.
    """

    def linear(h, w_ref, b_ref):
        return jnp.dot(h, w_ref[...], preferred_element_type=jnp.float32) + b_ref[...]

    h = x_ref[...]                                                   # bf16 (tb, F)
    h = jnp.maximum(linear(h, w1_ref, b1_ref), 0.0).astype(jnp.bfloat16)
    h = jnp.maximum(linear(h, w2_ref, b2_ref), 0.0).astype(jnp.bfloat16)
    h = jnp.maximum(linear(h, w3_ref, b3_ref), 0.0).astype(jnp.bfloat16)
    h = jnp.maximum(linear(h, w4_ref, b4_ref), 0.0).astype(jnp.bfloat16)
    h = linear(h, w5_ref, b5_ref)                                    # f32 (tb, out_pad)
    # Only lane 0 of the last layer is a real logit; store just that column so
    # the HBM writeback is 4 B/row instead of a full 128-lane f32 slab.
    o_ref[...] = h[:, :1].astype(o_ref.dtype)


# ------------------------------ param preparation ---------------------------

def _mxu_lane_multiple():
    """K/N padded to 256 on 256x256-MXU chips (v6e/v7x) when widths exceed 128."""
    try:
        kind = jax.devices()[0].device_kind.lower()
        if ("v2" in kind) or ("v3" in kind) or ("v4" in kind) or ("v5" in kind):
            return 128
        return 256
    except Exception:  # defensive: padding granularity never affects numerics
        return 128


def _pad_width(width, lane_mult):
    if width <= _LANE:
        return _LANE               # never inflate narrow layers past 128 lanes
    return _round_up(width, lane_mult)


def prepare_params(params):
    """One-time (off the hot path) padding + bf16 cast of the MLP parameters.

    params: list of 5 (weight (in, out) f32, bias (1, out) f32) tuples.
    Returns (prepared_params, out_dim).  Padding is numerically exact: zero
    output columns stay zero through bias-add/ReLU and zero K rows multiply
    zero activations.  Layer-0 keeps its true K so x needs no feature pad.
    Weights become bf16; biases stay f32 (they join the f32 accumulator).
    """
    out_dim = params[-1][0].shape[1]
    lane_mult = _mxu_lane_multiple()
    prepared = []
    prev_fo_pad = None
    for li, (w, b) in enumerate(params):
        fi, fo = w.shape
        if li == 0:
            fi_pad = fi
        else:
            assert params[li - 1][0].shape[1] == fi, "layer widths must chain"
            fi_pad = prev_fo_pad
        fo_pad = _pad_width(fo, lane_mult)
        w_p = jnp.pad(w, ((0, fi_pad - fi), (0, fo_pad - fo))).astype(jnp.bfloat16)
        b_p = jnp.pad(b, ((0, 0), (0, fo_pad - fo))).astype(jnp.float32)
        prepared.append((w_p, b_p))
        prev_fo_pad = fo_pad
    return prepared, out_dim


# ---------------------------------- forward ---------------------------------

def mlp_classifier_forward(feature_matrix_batch, prepared_params, out_dim=1, *,
                           tile_b=1024):
    """Mirrors MLPClassifer.forward: squeeze the singleton dim, run the MLP.

    feature_matrix_batch: (B, 1, F) float32 (or an already-squeezed (B, F)).
    prepared_params: output of prepare_params() (padded, bf16 weights).
    Returns (B, out_dim) float32 logits.
    """
    x = feature_matrix_batch
    if x.ndim == 3:
        x = jnp.squeeze(x, axis=1)      # axis=1 so B == 1 cannot change rank
    assert x.ndim == 2, "expected (batch, in_feature) after squeeze"
    B, F = x.shape
    assert prepared_params[0][0].shape[0] == F, "params do not match in_feature"

    # Batch tiling: biggest tile that fits, but >= 2 grid steps so both v7x
    # TensorCores get work whenever the batch allows it.
    b_ceil = _round_up(B, _SUBLANE)
    tb = _round_up(min(tile_b, b_ceil), _SUBLANE)
    if b_ceil > _SUBLANE and _cdiv(b_ceil, tb) < 2:
        tb = _round_up(_cdiv(b_ceil, 2), _SUBLANE)
    b_pad = _round_up(B, tb)
    num_tiles = b_pad // tb

    # bf16 x halves the kernel's HBM read; only the batch dim is padded
    # (the x BlockSpec keeps the true feature width — full-array last dim).
    x_p = x.astype(jnp.bfloat16)
    if b_pad != B:
        x_p = jnp.pad(x_p, ((0, b_pad - B), (0, 0)))

    x_spec = pl.BlockSpec((tb, F), lambda i: (i, 0))
    out_spec = pl.BlockSpec((tb, 1), lambda i: (i, 0))

    args = [x_p]
    for (w_p, b_p) in prepared_params:
        args.extend((w_p, b_p))

    # VMEM budget (single-buffered weights, double-buffered x/out tiles) and a
    # cost estimate so XLA can schedule the surrounding ops around the call.
    def _nbytes(a):
        return a.size * a.dtype.itemsize

    wb_bytes = sum(_nbytes(w) + _nbytes(b) for (w, b) in prepared_params)
    max_width = max(w.shape[1] for (w, _) in prepared_params)
    budget = (wb_bytes                    # resident weights + biases
              + 2 * tb * F * 2            # x tiles (bf16, double-buffered)
              + 2 * tb * 4                # out tiles (f32, double-buffered)
              + 4 * tb * max_width * 4    # intermediate activations / spills
              + (4 << 20))                # Mosaic temporaries headroom
    vmem_limit = int(min(max(budget, 32 << 20), 56 << 20))  # < v7x 64 MiB phys

    flops = 2 * b_pad * sum(w.shape[0] * w.shape[1] for (w, _) in prepared_params)
    bytes_accessed = _nbytes(x_p) + wb_bytes + b_pad * 4

    def _build(resident_mode):
        in_specs = [x_spec]
        for (w_p, b_p) in prepared_params:
            in_specs.append(pl.BlockSpec(w_p.shape, lambda i: (0, 0),
                                         pipeline_mode=resident_mode))
            in_specs.append(pl.BlockSpec(b_p.shape, lambda i: (0, 0),
                                         pipeline_mode=resident_mode))
        return pl.pallas_call(
            _mlp_kernel,
            out_shape=jax.ShapeDtypeStruct((b_pad, 1), jnp.float32),
            grid=(num_tiles,),
            in_specs=in_specs,
            out_specs=out_spec,
            compiler_params=pltpu.CompilerParams(
                dimension_semantics=("parallel",),   # shard batch across TCs
                vmem_limit_bytes=vmem_limit,
            ),
            cost_estimate=pl.CostEstimate(
                flops=flops, transcendentals=0, bytes_accessed=bytes_accessed),
        )

    try:
        # Constant-index weights/biases are fetched once; single-buffer them so
        # their VMEM footprint does not double (keeps the all-resident design
        # inside v7x's 64 MiB VMEM as in_feature grows).
        out = _build(pl.Buffered(1))(*args)
    except Exception:
        # Fallback if this jax build rejects pipeline_mode on the implicit TPU
        # pipeline: default double-buffering, identical numerics.
        out = _build(None)(*args)

    return out[:B, :out_dim]


# ----------------------------- init + reference -----------------------------

def _xavier_uniform(key, fan_in, fan_out, dtype=jnp.float32):
    # nn.init.xavier_uniform_ on the (fan_out, fan_in) torch weight; we build
    # the transposed (fan_in, fan_out) matrix directly (same distribution).
    limit = math.sqrt(6.0 / (fan_in + fan_out))
    return jax.random.uniform(key, (fan_in, fan_out), dtype,
                              minval=-limit, maxval=limit)


def _bias_init(key, fan_in, fan_out, dtype=jnp.float32):
    # PyTorch nn.Linear default bias init: U(-1/sqrt(fan_in), 1/sqrt(fan_in)).
    bound = 1.0 / math.sqrt(fan_in)
    return jax.random.uniform(key, (1, fan_out), dtype,
                              minval=-bound, maxval=bound)


def init_params(key, in_feature):
    dims = [
        (in_feature, in_feature * 2),
        (in_feature * 2, in_feature * 2 + 10),
        (in_feature * 2 + 10, in_feature * 2 + 20),
        (in_feature * 2 + 20, in_feature * 2 + 10),
        (in_feature * 2 + 10, 1),
    ]
    params = []
    for (fi, fo) in dims:
        key, kw, kb = jax.random.split(key, 3)
        params.append((_xavier_uniform(kw, fi, fo), _bias_init(kb, fi, fo)))
    return params


def _reference(feature_matrix_batch, params):
    h = jnp.squeeze(feature_matrix_batch, axis=1)
    for i, (w, b) in enumerate(params):
        h = h @ w + b
        if i < len(params) - 1:
            h = jnp.maximum(h, 0.0)
    return h


if __name__ == "__main__":
    key = jax.random.PRNGKey(0)
    k_x, k_p = jax.random.split(key)

    B, F = 64, 32
    # feature_matrix_batch carries the singleton dim that .squeeze() removes.
    feature_matrix_batch = jax.random.normal(k_x, (B, 1, F), dtype=jnp.float32)
    params = init_params(k_p, F)

    # Padding + bf16 cast happen exactly once, off the per-call path.
    prepared, out_dim = prepare_params(params)

    # tile_b default is 1024; the >=2-grid-step rule turns B=64 into two
    # 32-row tiles, exercising the pipelined multi-step grid.
    out = mlp_classifier_forward(feature_matrix_batch, prepared, out_dim)
    out = jax.block_until_ready(out)

    ref = _reference(feature_matrix_batch, params)
    assert out.shape == (B, 1), out.shape
    assert bool(jnp.isfinite(out).all())
    # bf16 matmul operands (f32 accumulation) vs the pure-f32 reference:
    # ~1e-2-level differences accumulate over the 5 chained layers.
    assert jnp.allclose(out, ref, atol=1e-1, rtol=5e-2), "mismatch vs reference"

    print("KERNEL_OK")
</pallas_src>

<mosaic_0001>
module attributes {stable_mosaic.version = 11 : i64} {
  func.func @_mlp_kernel(%arg0: i32, %arg1: memref<32x32xbf16, #tpu.memory_space<vmem>>, %arg2: memref<32x128xbf16, #tpu.memory_space<vmem>>, %arg3: memref<1x128xf32, #tpu.memory_space<vmem>>, %arg4: memref<128x128xbf16, #tpu.memory_space<vmem>>, %arg5: memref<1x128xf32, #tpu.memory_space<vmem>>, %arg6: memref<128x128xbf16, #tpu.memory_space<vmem>>, %arg7: memref<1x128xf32, #tpu.memory_space<vmem>>, %arg8: memref<128x128xbf16, #tpu.memory_space<vmem>>, %arg9: memref<1x128xf32, #tpu.memory_space<vmem>>, %arg10: memref<128x128xbf16, #tpu.memory_space<vmem>>, %arg11: memref<1x128xf32, #tpu.memory_space<vmem>>, %arg12: memref<32x1xf32, #tpu.memory_space<vmem>>) attributes {dimension_semantics = [#tpu.dimension_semantics<parallel>], iteration_bounds = array<i64: 2>, scalar_prefetch = 0 : i64, scratch_operands = 0 : i64, tpu.core_type = #tpu.core_type<tc>, window_params = [{transform_indices = @transform_0, window_bounds = array<i64: 32, 32>}, {pipeline_mode = #tpu.pipeline_mode<synchronous>, transform_indices = @transform_1, window_bounds = array<i64: 32, 128>}, {pipeline_mode = #tpu.pipeline_mode<synchronous>, transform_indices = @transform_2, window_bounds = array<i64: 1, 128>}, {pipeline_mode = #tpu.pipeline_mode<synchronous>, transform_indices = @transform_3, window_bounds = array<i64: 128, 128>}, {pipeline_mode = #tpu.pipeline_mode<synchronous>, transform_indices = @transform_4, window_bounds = array<i64: 1, 128>}, {pipeline_mode = #tpu.pipeline_mode<synchronous>, transform_indices = @transform_5, window_bounds = array<i64: 128, 128>}, {pipeline_mode = #tpu.pipeline_mode<synchronous>, transform_indices = @transform_6, window_bounds = array<i64: 1, 128>}, {pipeline_mode = #tpu.pipeline_mode<synchronous>, transform_indices = @transform_7, window_bounds = array<i64: 128, 128>}, {pipeline_mode = #tpu.pipeline_mode<synchronous>, transform_indices = @transform_8, window_bounds = array<i64: 1, 128>}, {pipeline_mode = #tpu.pipeline_mode<synchronous>, transform_indices = @transform_9, window_bounds = array<i64: 128, 128>}, {pipeline_mode = #tpu.pipeline_mode<synchronous>, transform_indices = @transform_10, window_bounds = array<i64: 1, 128>}, {transform_indices = @transform_11, window_bounds = array<i64: 32, 1>}]} {
    %c0 = arith.constant 0 : index
    %c0_0 = arith.constant 0 : index
    %0 = vector.load %arg1[%c0, %c0_0] : memref<32x32xbf16, #tpu.memory_space<vmem>>, vector<32x32xbf16>
    %c0_1 = arith.constant 0 : index
    %c0_2 = arith.constant 0 : index
    %1 = vector.load %arg2[%c0_1, %c0_2] : memref<32x128xbf16, #tpu.memory_space<vmem>>, vector<32x128xbf16>
    %cst = arith.constant dense<0.000000e+00> : vector<32x128xf32>
    %2 = tpu.matmul %0, %1, %cst {dimension_numbers = #tpu.dot_dimension_numbers<[1], [0], [0], [1], [0, 0, 1, 1], [], []>} : vector<32x32xbf16>, vector<32x128xbf16>, vector<32x128xf32> -> vector<32x128xf32>
    %c0_3 = arith.constant 0 : index
    %c0_4 = arith.constant 0 : index
    %3 = vector.load %arg3[%c0_3, %c0_4] : memref<1x128xf32, #tpu.memory_space<vmem>>, vector<1x128xf32>
    %4 = vector.broadcast %3 : vector<1x128xf32> to vector<32x128xf32>
    %5 = arith.addf %2, %4 : vector<32x128xf32>
    %cst_5 = arith.constant 0.000000e+00 : f32
    %6 = vector.broadcast %cst_5 : f32 to vector<32x128xf32>
    %7 = arith.maximumf %5, %6 : vector<32x128xf32>
    %8 = arith.truncf %7 : vector<32x128xf32> to vector<32x128xbf16>
    %c0_6 = arith.constant 0 : index
    %c0_7 = arith.constant 0 : index
    %9 = vector.load %arg4[%c0_6, %c0_7] : memref<128x128xbf16, #tpu.memory_space<vmem>>, vector<128x128xbf16>
    %cst_8 = arith.constant dense<0.000000e+00> : vector<32x128xf32>
    %10 = tpu.matmul %8, %9, %cst_8 {dimension_numbers = #tpu.dot_dimension_numbers<[1], [0], [0], [1], [0, 0, 1, 1], [], []>} : vector<32x128xbf16>, vector<128x128xbf16>, vector<32x128xf32> -> vector<32x128xf32>
    %c0_9 = arith.constant 0 : index
    %c0_10 = arith.constant 0 : index
    %11 = vector.load %arg5[%c0_9, %c0_10] : memref<1x128xf32, #tpu.memory_space<vmem>>, vector<1x128xf32>
    %12 = vector.broadcast %11 : vector<1x128xf32> to vector<32x128xf32>
    %13 = arith.addf %10, %12 : vector<32x128xf32>
    %cst_11 = arith.constant 0.000000e+00 : f32
    %14 = vector.broadcast %cst_11 : f32 to vector<32x128xf32>
    %15 = arith.maximumf %13, %14 : vector<32x128xf32>
    %16 = arith.truncf %15 : vector<32x128xf32> to vector<32x128xbf16>
    %c0_12 = arith.constant 0 : index
    %c0_13 = arith.constant 0 : index
    %17 = vector.load %arg6[%c0_12, %c0_13] : memref<128x128xbf16, #tpu.memory_space<vmem>>, vector<128x128xbf16>
    %cst_14 = arith.constant dense<0.000000e+00> : vector<32x128xf32>
    %18 = tpu.matmul %16, %17, %cst_14 {dimension_numbers = #tpu.dot_dimension_numbers<[1], [0], [0], [1], [0, 0, 1, 1], [], []>} : vector<32x128xbf16>, vector<128x128xbf16>, vector<32x128xf32> -> vector<32x128xf32>
    %c0_15 = arith.constant 0 : index
    %c0_16 = arith.constant 0 : index
    %19 = vector.load %arg7[%c0_15, %c0_16] : memref<1x128xf32, #tpu.memory_space<vmem>>, vector<1x128xf32>
    %20 = vector.broadcast %19 : vector<1x128xf32> to vector<32x128xf32>
    %21 = arith.addf %18, %20 : vector<32x128xf32>
    %cst_17 = arith.constant 0.000000e+00 : f32
    %22 = vector.broadcast %cst_17 : f32 to vector<32x128xf32>
    %23 = arith.maximumf %21, %22 : vector<32x128xf32>
    %24 = arith.truncf %23 : vector<32x128xf32> to vector<32x128xbf16>
    %c0_18 = arith.constant 0 : index
    %c0_19 = arith.constant 0 : index
    %25 = vector.load %arg8[%c0_18, %c0_19] : memref<128x128xbf16, #tpu.memory_space<vmem>>, vector<128x128xbf16>
    %cst_20 = arith.constant dense<0.000000e+00> : vector<32x128xf32>
    %26 = tpu.matmul %24, %25, %cst_20 {dimension_numbers = #tpu.dot_dimension_numbers<[1], [0], [0], [1], [0, 0, 1, 1], [], []>} : vector<32x128xbf16>, vector<128x128xbf16>, vector<32x128xf32> -> vector<32x128xf32>
    %c0_21 = arith.constant 0 : index
    %c0_22 = arith.constant 0 : index
    %27 = vector.load %arg9[%c0_21, %c0_22] : memref<1x128xf32, #tpu.memory_space<vmem>>, vector<1x128xf32>
    %28 = vector.broadcast %27 : vector<1x128xf32> to vector<32x128xf32>
    %29 = arith.addf %26, %28 : vector<32x128xf32>
    %cst_23 = arith.constant 0.000000e+00 : f32
    %30 = vector.broadcast %cst_23 : f32 to vector<32x128xf32>
    %31 = arith.maximumf %29, %30 : vector<32x128xf32>
    %32 = arith.truncf %31 : vector<32x128xf32> to vector<32x128xbf16>
    %c0_24 = arith.constant 0 : index
    %c0_25 = arith.constant 0 : index
    %33 = vector.load %arg10[%c0_24, %c0_25] : memref<128x128xbf16, #tpu.memory_space<vmem>>, vector<128x128xbf16>
    %cst_26 = arith.constant dense<0.000000e+00> : vector<32x128xf32>
    %34 = tpu.matmul %32, %33, %cst_26 {dimension_numbers = #tpu.dot_dimension_numbers<[1], [0], [0], [1], [0, 0, 1, 1], [], []>} : vector<32x128xbf16>, vector<128x128xbf16>, vector<32x128xf32> -> vector<32x128xf32>
    %c0_27 = arith.constant 0 : index
    %c0_28 = arith.constant 0 : index
    %35 = vector.load %arg11[%c0_27, %c0_28] : memref<1x128xf32, #tpu.memory_space<vmem>>, vector<1x128xf32>
    %36 = vector.broadcast %35 : vector<1x128xf32> to vector<32x128xf32>
    %37 = arith.addf %34, %36 : vector<32x128xf32>
    %38 = vector.extract_strided_slice %37 {offsets = [0, 0], sizes = [32, 1], strides = [1, 1]} : vector<32x128xf32> to vector<32x1xf32>
    %c0_29 = arith.constant 0 : index
    %c0_30 = arith.constant 0 : index
    %39 = vector.load %arg12[%c0_29, %c0_30] : memref<32x1xf32, #tpu.memory_space<vmem>>, vector<32x1xf32>
    tpu.vector_store %arg12[%c0_29, %c0_30], %38 {strides = array<i32>} : memref<32x1xf32, #tpu.memory_space<vmem>>, vector<32x1xf32>,
    return
  }
  func.func @transform_0(%arg0: i32) -> (i32, i32) {
    %c0_i32 = arith.constant 0 : i32
    %c0_i32_0 = arith.constant 0 : i32
    return %arg0, %c0_i32 : i32, i32
  }
  func.func @transform_1(%arg0: i32) -> (i32, i32) {
    %c0_i32 = arith.constant 0 : i32
    %c0_i32_0 = arith.constant 0 : i32
    %c0_i32_1 = arith.constant 0 : i32
    return %c0_i32, %c0_i32_0 : i32, i32
  }
  func.func @transform_2(%arg0: i32) -> (i32, i32) {
    %c0_i32 = arith.constant 0 : i32
    %c0_i32_0 = arith.constant 0 : i32
    %c0_i32_1 = arith.constant 0 : i32
    return %c0_i32, %c0_i32_0 : i32, i32
  }
  func.func @transform_3(%arg0: i32) -> (i32, i32) {
    %c0_i32 = arith.constant 0 : i32
    %c0_i32_0 = arith.constant 0 : i32
    %c0_i32_1 = arith.constant 0 : i32
    return %c0_i32, %c0_i32_0 : i32, i32
  }
  func.func @transform_4(%arg0: i32) -> (i32, i32) {
    %c0_i32 = arith.constant 0 : i32
    %c0_i32_0 = arith.constant 0 : i32
    %c0_i32_1 = arith.constant 0 : i32
    return %c0_i32, %c0_i32_0 : i32, i32
  }
  func.func @transform_5(%arg0: i32) -> (i32, i32) {
    %c0_i32 = arith.constant 0 : i32
    %c0_i32_0 = arith.constant 0 : i32
    %c0_i32_1 = arith.constant 0 : i32
    return %c0_i32, %c0_i32_0 : i32, i32
  }
  func.func @transform_6(%arg0: i32) -> (i32, i32) {
    %c0_i32 = arith.constant 0 : i32
    %c0_i32_0 = arith.constant 0 : i32
    %c0_i32_1 = arith.constant 0 : i32
    return %c0_i32, %c0_i32_0 : i32, i32
  }
  func.func @transform_7(%arg0: i32) -> (i32, i32) {
    %c0_i32 = arith.constant 0 : i32
    %c0_i32_0 = arith.constant 0 : i32
    %c0_i32_1 = arith.constant 0 : i32
    return %c0_i32, %c0_i32_0 : i32, i32
  }
  func.func @transform_8(%arg0: i32) -> (i32, i32) {
    %c0_i32 = arith.constant 0 : i32
    %c0_i32_0 = arith.constant 0 : i32
    %c0_i32_1 = arith.constant 0 : i32
    return %c0_i32, %c0_i32_0 : i32, i32
  }
  func.func @transform_9(%arg0: i32) -> (i32, i32) {
    %c0_i32 = arith.constant 0 : i32
    %c0_i32_0 = arith.constant 0 : i32
    %c0_i32_1 = arith.constant 0 : i32
    return %c0_i32, %c0_i32_0 : i32, i32
  }
  func.func @transform_10(%arg0: i32) -> (i32, i32) {
    %c0_i32 = arith.constant 0 : i32
    %c0_i32_0 = arith.constant 0 : i32
    %c0_i32_1 = arith.constant 0 : i32
    return %c0_i32, %c0_i32_0 : i32, i32
  }
  func.func @transform_11(%arg0: i32) -> (i32, i32) {
    %c0_i32 = arith.constant 0 : i32
    %c0_i32_0 = arith.constant 0 : i32
    return %arg0, %c0_i32 : i32, i32
  }
}

module attributes {stable_mosaic.version = 11 : i64} {
  func.func @_mlp_kernel(%arg0: i32, %arg1: memref<32x32xbf16, #tpu.memory_space<vmem>>, %arg2: memref<32x128xbf16, #tpu.memory_space<vmem>>, %arg3: memref<1x128xf32, #tpu.memory_space<vmem>>, %arg4: memref<128x128xbf16, #tpu.memory_space<vmem>>, %arg5: memref<1x128xf32, #tpu.memory_space<vmem>>, %arg6: memref<128x128xbf16, #tpu.memory_space<vmem>>, %arg7: memref<1x128xf32, #tpu.memory_space<vmem>>, %arg8: memref<128x128xbf16, #tpu.memory_space<vmem>>, %arg9: memref<1x128xf32, #tpu.memory_space<vmem>>, %arg10: memref<128x128xbf16, #tpu.memory_space<vmem>>, %arg11: memref<1x128xf32, #tpu.memory_space<vmem>>, %arg12: memref<32x1xf32, #tpu.memory_space<vmem>>) attributes {dimension_semantics = [#tpu.dimension_semantics<parallel>], iteration_bounds = array<i64: 2>, scalar_prefetch = 0 : i64, scratch_operands = 0 : i64, tpu.core_type = #tpu.core_type<tc>, window_params = [{transform_indices = @transform_0, window_bounds = array<i64: 32, 32>}, {pipeline_mode = #tpu.pipeline_mode<synchronous>, transform_indices = @transform_1, window_bounds = array<i64: 32, 128>}, {pipeline_mode = #tpu.pipeline_mode<synchronous>, transform_indices = @transform_2, window_bounds = array<i64: 1, 128>}, {pipeline_mode = #tpu.pipeline_mode<synchronous>, transform_indices = @transform_3, window_bounds = array<i64: 128, 128>}, {pipeline_mode = #tpu.pipeline_mode<synchronous>, transform_indices = @transform_4, window_bounds = array<i64: 1, 128>}, {pipeline_mode = #tpu.pipeline_mode<synchronous>, transform_indices = @transform_5, window_bounds = array<i64: 128, 128>}, {pipeline_mode = #tpu.pipeline_mode<synchronous>, transform_indices = @transform_6, window_bounds = array<i64: 1, 128>}, {pipeline_mode = #tpu.pipeline_mode<synchronous>, transform_indices = @transform_7, window_bounds = array<i64: 128, 128>}, {pipeline_mode = #tpu.pipeline_mode<synchronous>, transform_indices = @transform_8, window_bounds = array<i64: 1, 128>}, {pipeline_mode = #tpu.pipeline_mode<synchronous>, transform_indices = @transform_9, window_bounds = array<i64: 128, 128>}, {pipeline_mode = #tpu.pipeline_mode<synchronous>, transform_indices = @transform_10, window_bounds = array<i64: 1, 128>}, {transform_indices = @transform_11, window_bounds = array<i64: 32, 1>}]} {
    %c0 = arith.constant 0 : index
    %c0_0 = arith.constant 0 : index
    %0 = vector.load %arg1[%c0, %c0_0] : memref<32x32xbf16, #tpu.memory_space<vmem>>, vector<32x32xbf16>
    %c0_1 = arith.constant 0 : index
    %c0_2 = arith.constant 0 : index
    %1 = vector.load %arg2[%c0_1, %c0_2] : memref<32x128xbf16, #tpu.memory_space<vmem>>, vector<32x128xbf16>
    %cst = arith.constant dense<0.000000e+00> : vector<32x128xf32>
    %2 = tpu.matmul %0, %1, %cst {dimension_numbers = #tpu.dot_dimension_numbers<[1], [0], [0], [1], [0, 0, 1, 1], [], []>} : vector<32x32xbf16>, vector<32x128xbf16>, vector<32x128xf32> -> vector<32x128xf32>
    %c0_3 = arith.constant 0 : index
    %c0_4 = arith.constant 0 : index
    %3 = vector.load %arg3[%c0_3, %c0_4] : memref<1x128xf32, #tpu.memory_space<vmem>>, vector<1x128xf32>
    %4 = vector.broadcast %3 : vector<1x128xf32> to vector<32x128xf32>
    %5 = arith.addf %2, %4 : vector<32x128xf32>
    %cst_5 = arith.constant 0.000000e+00 : f32
    %6 = vector.broadcast %cst_5 : f32 to vector<32x128xf32>
    %7 = arith.maximumf %5, %6 : vector<32x128xf32>
    %8 = arith.truncf %7 : vector<32x128xf32> to vector<32x128xbf16>
    %c0_6 = arith.constant 0 : index
    %c0_7 = arith.constant 0 : index
    %9 = vector.load %arg4[%c0_6, %c0_7] : memref<128x128xbf16, #tpu.memory_space<vmem>>, vector<128x128xbf16>
    %cst_8 = arith.constant dense<0.000000e+00> : vector<32x128xf32>
    %10 = tpu.matmul %8, %9, %cst_8 {dimension_numbers = #tpu.dot_dimension_numbers<[1], [0], [0], [1], [0, 0, 1, 1], [], []>} : vector<32x128xbf16>, vector<128x128xbf16>, vector<32x128xf32> -> vector<32x128xf32>
    %c0_9 = arith.constant 0 : index
    %c0_10 = arith.constant 0 : index
    %11 = vector.load %arg5[%c0_9, %c0_10] : memref<1x128xf32, #tpu.memory_space<vmem>>, vector<1x128xf32>
    %12 = vector.broadcast %11 : vector<1x128xf32> to vector<32x128xf32>
    %13 = arith.addf %10, %12 : vector<32x128xf32>
    %cst_11 = arith.constant 0.000000e+00 : f32
    %14 = vector.broadcast %cst_11 : f32 to vector<32x128xf32>
    %15 = arith.maximumf %13, %14 : vector<32x128xf32>
    %16 = arith.truncf %15 : vector<32x128xf32> to vector<32x128xbf16>
    %c0_12 = arith.constant 0 : index
    %c0_13 = arith.constant 0 : index
    %17 = vector.load %arg6[%c0_12, %c0_13] : memref<128x128xbf16, #tpu.memory_space<vmem>>, vector<128x128xbf16>
    %cst_14 = arith.constant dense<0.000000e+00> : vector<32x128xf32>
    %18 = tpu.matmul %16, %17, %cst_14 {dimension_numbers = #tpu.dot_dimension_numbers<[1], [0], [0], [1], [0, 0, 1, 1], [], []>} : vector<32x128xbf16>, vector<128x128xbf16>, vector<32x128xf32> -> vector<32x128xf32>
    %c0_15 = arith.constant 0 : index
    %c0_16 = arith.constant 0 : index
    %19 = vector.load %arg7[%c0_15, %c0_16] : memref<1x128xf32, #tpu.memory_space<vmem>>, vector<1x128xf32>
    %20 = vector.broadcast %19 : vector<1x128xf32> to vector<32x128xf32>
    %21 = arith.addf %18, %20 : vector<32x128xf32>
    %cst_17 = arith.constant 0.000000e+00 : f32
    %22 = vector.broadcast %cst_17 : f32 to vector<32x128xf32>
    %23 = arith.maximumf %21, %22 : vector<32x128xf32>
    %24 = arith.truncf %23 : vector<32x128xf32> to vector<32x128xbf16>
    %c0_18 = arith.constant 0 : index
    %c0_19 = arith.constant 0 : index
    %25 = vector.load %arg8[%c0_18, %c0_19] : memref<128x128xbf16, #tpu.memory_space<vmem>>, vector<128x128xbf16>
    %cst_20 = arith.constant dense<0.000000e+00> : vector<32x128xf32>
    %26 = tpu.matmul %24, %25, %cst_20 {dimension_numbers = #tpu.dot_dimension_numbers<[1], [0], [0], [1], [0, 0, 1, 1], [], []>} : vector<32x128xbf16>, vector<128x128xbf16>, vector<32x128xf32> -> vector<32x128xf32>
    %c0_21 = arith.constant 0 : index
    %c0_22 = arith.constant 0 : index
    %27 = vector.load %arg9[%c0_21, %c0_22] : memref<1x128xf32, #tpu.memory_space<vmem>>, vector<1x128xf32>
    %28 = vector.broadcast %27 : vector<1x128xf32> to vector<32x128xf32>
    %29 = arith.addf %26, %28 : vector<32x128xf32>
    %cst_23 = arith.constant 0.000000e+00 : f32
    %30 = vector.broadcast %cst_23 : f32 to vector<32x128xf32>
    %31 = arith.maximumf %29, %30 : vector<32x128xf32>
    %32 = arith.truncf %31 : vector<32x128xf32> to vector<32x128xbf16>
    %c0_24 = arith.constant 0 : index
    %c0_25 = arith.constant 0 : index
    %33 = vector.load %arg10[%c0_24, %c0_25] : memref<128x128xbf16, #tpu.memory_space<vmem>>, vector<128x128xbf16>
    %cst_26 = arith.constant dense<0.000000e+00> : vector<32x128xf32>
    %34 = tpu.matmul %32, %33, %cst_26 {dimension_numbers = #tpu.dot_dimension_numbers<[1], [0], [0], [1], [0, 0, 1, 1], [], []>} : vector<32x128xbf16>, vector<128x128xbf16>, vector<32x128xf32> -> vector<32x128xf32>
    %c0_27 = arith.constant 0 : index
    %c0_28 = arith.constant 0 : index
    %35 = vector.load %arg11[%c0_27, %c0_28] : memref<1x128xf32, #tpu.memory_space<vmem>>, vector<1x128xf32>
    %36 = vector.broadcast %35 : vector<1x128xf32> to vector<32x128xf32>
    %37 = arith.addf %34, %36 : vector<32x128xf32>
    %38 = vector.extract_strided_slice %37 {offsets = [0, 0], sizes = [32, 1], strides = [1, 1]} : vector<32x128xf32> to vector<32x1xf32>
    %c0_29 = arith.constant 0 : index
    %c0_30 = arith.constant 0 : index
    %39 = vector.load %arg12[%c0_29, %c0_30] : memref<32x1xf32, #tpu.memory_space<vmem>>, vector<32x1xf32>
    tpu.vector_store %arg12[%c0_29, %c0_30], %38 {strides = array<i32>} : memref<32x1xf32, #tpu.memory_space<vmem>>, vector<32x1xf32>,
    return
  }
  func.func @transform_0(%arg0: i32) -> (i32, i32) {
    %c0_i32 = arith.constant 0 : i32
    %c0_i32_0 = arith.constant 0 : i32
    return %arg0, %c0_i32 : i32, i32
  }
  func.func @transform_1(%arg0: i32) -> (i32, i32) {
    %c0_i32 = arith.constant 0 : i32
    %c0_i32_0 = arith.constant 0 : i32
    %c0_i32_1 = arith.constant 0 : i32
    return %c0_i32, %c0_i32_0 : i32, i32
  }
  func.func @transform_2(%arg0: i32) -> (i32, i32) {
    %c0_i32 = arith.constant 0 : i32
    %c0_i32_0 = arith.constant 0 : i32
    %c0_i32_1 = arith.constant 0 : i32
    return %c0_i32, %c0_i32_0 : i32, i32
  }
  func.func @transform_3(%arg0: i32) -> (i32, i32) {
    %c0_i32 = arith.constant 0 : i32
    %c0_i32_0 = arith.constant 0 : i32
    %c0_i32_1 = arith.constant 0 : i32
    return %c0_i32, %c0_i32_0 : i32, i32
  }
  func.func @transform_4(%arg0: i32) -> (i32, i32) {
    %c0_i32 = arith.constant 0 : i32
    %c0_i32_0 = arith.constant 0 : i32
    %c0_i32_1 = arith.constant 0 : i32
    return %c0_i32, %c0_i32_0 : i32, i32
  }
  func.func @transform_5(%arg0: i32) -> (i32, i32) {
    %c0_i32 = arith.constant 0 : i32
    %c0_i32_0 = arith.constant 0 : i32
    %c0_i32_1 = arith.constant 0 : i32
    return %c0_i32, %c0_i32_0 : i32, i32
  }
  func.func @transform_6(%arg0: i32) -> (i32, i32) {
    %c0_i32 = arith.constant 0 : i32
    %c0_i32_0 = arith.constant 0 : i32
    %c0_i32_1 = arith.constant 0 : i32
    return %c0_i32, %c0_i32_0 : i32, i32
  }
  func.func @transform_7(%arg0: i32) -> (i32, i32) {
    %c0_i32 = arith.constant 0 : i32
    %c0_i32_0 = arith.constant 0 : i32
    %c0_i32_1 = arith.constant 0 : i32
    return %c0_i32, %c0_i32_0 : i32, i32
  }
  func.func @transform_8(%arg0: i32) -> (i32, i32) {
    %c0_i32 = arith.constant 0 : i32
    %c0_i32_0 = arith.constant 0 : i32
    %c0_i32_1 = arith.constant 0 : i32
    return %c0_i32, %c0_i32_0 : i32, i32
  }
  func.func @transform_9(%arg0: i32) -> (i32, i32) {
    %c0_i32 = arith.constant 0 : i32
    %c0_i32_0 = arith.constant 0 : i32
    %c0_i32_1 = arith.constant 0 : i32
    return %c0_i32, %c0_i32_0 : i32, i32
  }
  func.func @transform_10(%arg0: i32) -> (i32, i32) {
    %c0_i32 = arith.constant 0 : i32
    %c0_i32_0 = arith.constant 0 : i32
    %c0_i32_1 = arith.constant 0 : i32
    return %c0_i32, %c0_i32_0 : i32, i32
  }
  func.func @transform_11(%arg0: i32) -> (i32, i32) {
    %c0_i32 = arith.constant 0 : i32
    %c0_i32_0 = arith.constant 0 : i32
    return %arg0, %c0_i32 : i32, i32
  }
}

</mosaic_0001>

<llo_original>
// kernel: tpu_custom_call.1
$region0: #{tpu_custom_call.1}
  #allocation0 [shape = 'u32[]', space=smem, size = 0x4, offset = 0x4, fixed_abs, tag = 'smem constant byte address 0x4 - core index']
  #allocation1 [shape = 'u32[72,128]{1,0:T(1,128)}', space=vmem, size = 0x9000, scoped, tag = 'internal scratch']
  %s0 = inlined_call_operand.vmem [shape: bf16[64,32], index: 0, kind: input, shape index: {}]
  %s1 = inlined_call_operand.vmem [shape: bf16[32,128], index: 1, kind: input, shape index: {}]
  %s2 = inlined_call_operand.vmem [shape: f32[1,128], index: 2, kind: input, shape index: {}]
  %s3 = inlined_call_operand.hbm [shape: bf16[128,128], index: 3, kind: input, shape index: {}]
  %s4 = inlined_call_operand.vmem [shape: f32[1,128], index: 4, kind: input, shape index: {}]
  %s5 = inlined_call_operand.hbm [shape: bf16[128,128], index: 5, kind: input, shape index: {}]
  %s6 = inlined_call_operand.vmem [shape: f32[1,128], index: 6, kind: input, shape index: {}]
  %s7 = inlined_call_operand.hbm [shape: bf16[128,128], index: 7, kind: input, shape index: {}]
  %s8 = inlined_call_operand.vmem [shape: f32[1,128], index: 8, kind: input, shape index: {}]
  %s9 = inlined_call_operand.hbm [shape: bf16[128,128], index: 9, kind: input, shape index: {}]
  %s10 = inlined_call_operand.vmem [shape: f32[1,128], index: 10, kind: input, shape index: {}]
  %s11 = inlined_call_operand.vmem [shape: f32[64,1], index: 11, kind: output, shape index: {}]
  %s12 = sld [smem:[#allocation0]]
  $region93: #{tpu_custom_call.1} parent=0
    _
  %s14 = ssub.s32 1, %s12
  %s15 = scalar_select 0, %s14, %s12
  $region1: #{tpu_custom_call.1} parent=0
    #allocation2 [shape = 'u8[32768]{0}', space=vmem, size = 0x8000, scoped, tag = 'input window, operand 3, single buffered']
    #allocation3 [shape = 's32[2]{0}', space=sflag, size = 0x8, scoped, tag = 'scoped memory for tpu_custom_call.1']
    #allocation4 [shape = 'u8[32768]{0}', space=vmem, size = 0x8000, scoped, tag = 'input window, operand 5, single buffered']
    #allocation5 [shape = 's32[1]{0}', space=sflag, size = 0x4, scoped, tag = 'scoped memory for tpu_custom_call.1']
    #allocation6 [shape = 'u8[32768]{0}', space=vmem, size = 0x8000, scoped, tag = 'input window, operand 7, single buffered']
    #allocation7 [shape = 'u8[32768]{0}', space=vmem, size = 0x8000, scoped, tag = 'input window, operand 9, single buffered']
    #allocation8 [shape = 's32[1]{0}', space=sflag, size = 0x4, scoped, tag = 'scoped memory for tpu_custom_call.1']
    %16 = vsyncpa [#allocation3], 0
    %17 = vsyncpa [#allocation5], 0
    %18 = vsyncpa [#allocation8], 0
    loop: start=0, step=1, limit=4
    $region2: #{tpu_custom_call.1} parent=1 // loop_pre_header
      _
    $region3: #{tpu_custom_call.1} parent=1 // loop_header
      %s20 = sphi 0, %s24
      %p21 = scmp.ge.s32.totalorder %s20, 4
      %s30 = sphi 0, %s32
      %s33 = sphi 0, %s30
      %s34 = sphi 0, %s33
      %s50 = sphi 0, %s34
      %s54 = sphi 0, %s54
      %s56 = sphi 0, %s54
      %s57 = sphi 0, %s56
      %s71 = sphi 0, %s57
      %s75 = sphi 0, %s75
      %s77 = sphi 0, %s75
      %s78 = sphi 0, %s77
      %s92 = sphi 0, %s78
      %s96 = sphi 0, %s96
      %s98 = sphi 0, %s96
      %s99 = sphi 0, %s98
      %s113 = sphi 0, %s99
      %s117 = sphi 0, %s117
      %s119 = sphi 0, %s117
      %s120 = sphi 0, %s119
      %s134 = sphi 0, %s120
      %s138 = sphi 0, %s138
      %s140 = sphi 0, %s138
      %s141 = sphi 0, %s140
      %s155 = sphi 0, %s141
      %s159 = sphi 0, %s159
      %s161 = sphi 0, %s159
      %s162 = sphi 0, %s161
      %s176 = sphi 0, %s162
      %s180 = sphi 0, %s180
      %s182 = sphi 0, %s180
      %s183 = sphi 0, %s182
      %s197 = sphi 0, %s183
      %s201 = sphi 0, %s201
      %s203 = sphi 0, %s201
      %s204 = sphi 0, %s203
      %s218 = sphi 0, %s204
      %s222 = sphi 0, %s222
      %s224 = sphi 0, %s222
      %s225 = sphi 0, %s224
      %s239 = sphi 0, %s225
      %s243 = sphi 0, %s243
      %s245 = sphi 0, %s243
      %s246 = sphi 0, %s245
      %s260 = sphi 0, %s246
      %s266 = sphi 0, %s268
      %s269 = sphi 0, %s266
      %s270 = sphi 0, %s269
      %s286 = sphi 0, %s270
    $region4: #{tpu_custom_call.1} parent=1 // loop_header_branch
      %23 = sbr.rel (%p21) target = $region8
    $region5: #{tpu_custom_call.1} parent=1 // loop_body
      %s25 = ssub.s32 %s20, 1
      %s26 = ssub.s32 %s20, 2
      %s27 = sadd.s32 %s20, 1
      %s28 = ssub.s32 %s20, %s27
      %p29 = scmp.eq.s32.totalorder %s28, 0
      %s31 = sadd.s32 %s30, 1
      %s32 = scalar_select %p29, %s30, %s31
      %p35 = pneg %p29
      %p36 = scmp.eq.s32.totalorder %s20, 1
      %p37 = por %p35, %p36
      %p38 = scmp.ne.s32.totalorder %s30, %s33
      %p39 = scmp.eq.s32.totalorder %s20, 0
      %p40 = por %p38, %p39
      %p41 = scmp.ne.s32.totalorder %s30, %s33
      %p42 = scmp.eq.s32.totalorder %s25, 1
      %p43 = por %p41, %p42
      %p44 = scmp.ne.s32.totalorder %s33, %s34
      %p45 = scmp.eq.s32.totalorder %s25, 0
      %p46 = por %p44, %p45
      %p47 = scmp.ne.s32.totalorder %s33, %s34
      %p48 = scmp.eq.s32.totalorder %s26, 1
      %p49 = por %p47, %p48
      %p51 = scmp.ne.s32.totalorder %s34, %s50
      %p52 = scmp.eq.s32.totalorder %s26, 0
      %p53 = por %p51, %p52
      %s55 = sadd.s32 %s54, 1
      %p58 = scmp.eq.s32.totalorder %s20, 1
      %p59 = scmp.ne.s32.totalorder %s54, %s56
      %p60 = scmp.eq.s32.totalorder %s20, 0
      %p61 = por %p59, %p60
      %p62 = scmp.ne.s32.totalorder %s54, %s56
      %p63 = scmp.eq.s32.totalorder %s25, 1
      %p64 = por %p62, %p63
      %p65 = scmp.ne.s32.totalorder %s56, %s57
      %p66 = scmp.eq.s32.totalorder %s25, 0
      %p67 = por %p65, %p66
      %p68 = scmp.ne.s32.totalorder %s56, %s57
      %p69 = scmp.eq.s32.totalorder %s26, 1
      %p70 = por %p68, %p69
      %p72 = scmp.ne.s32.totalorder %s57, %s71
      %p73 = scmp.eq.s32.totalorder %s26, 0
      %p74 = por %p72, %p73
      %s76 = sadd.s32 %s75, 1
      %p79 = scmp.eq.s32.totalorder %s20, 1
      %p80 = scmp.ne.s32.totalorder %s75, %s77
      %p81 = scmp.eq.s32.totalorder %s20, 0
      %p82 = por %p80, %p81
      %p83 = scmp.ne.s32.totalorder %s75, %s77
      %p84 = scmp.eq.s32.totalorder %s25, 1
      %p85 = por %p83, %p84
      %p86 = scmp.ne.s32.totalorder %s77, %s78
      %p87 = scmp.eq.s32.totalorder %s25, 0
      %p88 = por %p86, %p87
      %p89 = scmp.ne.s32.totalorder %s77, %s78
      %p90 = scmp.eq.s32.totalorder %s26, 1
      %p91 = por %p89, %p90
      %p93 = scmp.ne.s32.totalorder %s78, %s92
      %p94 = scmp.eq.s32.totalorder %s26, 0
      %p95 = por %p93, %p94
      %s97 = sadd.s32 %s96, 1
      %p100 = scmp.eq.s32.totalorder %s20, 1
      %p101 = scmp.ne.s32.totalorder %s96, %s98
      %p102 = scmp.eq.s32.totalorder %s20, 0
      %p103 = por %p101, %p102
      %p104 = scmp.ne.s32.totalorder %s96, %s98
      %p105 = scmp.eq.s32.totalorder %s25, 1
      %p106 = por %p104, %p105
      %p107 = scmp.ne.s32.totalorder %s98, %s99
      %p108 = scmp.eq.s32.totalorder %s25, 0
      %p109 = por %p107, %p108
      %p110 = scmp.ne.s32.totalorder %s98, %s99
      %p111 = scmp.eq.s32.totalorder %s26, 1
      %p112 = por %p110, %p111
      %p114 = scmp.ne.s32.totalorder %s99, %s113
      %p115 = scmp.eq.s32.totalorder %s26, 0
      %p116 = por %p114, %p115
      %s118 = sadd.s32 %s117, 1
      %p121 = scmp.eq.s32.totalorder %s20, 1
      %p122 = scmp.ne.s32.totalorder %s117, %s119
      %p123 = scmp.eq.s32.totalorder %s20, 0
      %p124 = por %p122, %p123
      %p125 = scmp.ne.s32.totalorder %s117, %s119
      %p126 = scmp.eq.s32.totalorder %s25, 1
      %p127 = por %p125, %p126
      %p128 = scmp.ne.s32.totalorder %s119, %s120
      %p129 = scmp.eq.s32.totalorder %s25, 0
      %p130 = por %p128, %p129
      %p131 = scmp.ne.s32.totalorder %s119, %s120
      %p132 = scmp.eq.s32.totalorder %s26, 1
      %p133 = por %p131, %p132
      %p135 = scmp.ne.s32.totalorder %s120, %s134
      %p136 = scmp.eq.s32.totalorder %s26, 0
      %p137 = por %p135, %p136
      %s139 = sadd.s32 %s138, 1
      %p142 = scmp.eq.s32.totalorder %s20, 1
      %p143 = scmp.ne.s32.totalorder %s138, %s140
      %p144 = scmp.eq.s32.totalorder %s20, 0
      %p145 = por %p143, %p144
      %p146 = scmp.ne.s32.totalorder %s138, %s140
      %p147 = scmp.eq.s32.totalorder %s25, 1
      %p148 = por %p146, %p147
      %p149 = scmp.ne.s32.totalorder %s140, %s141
      %p150 = scmp.eq.s32.totalorder %s25, 0
      %p151 = por %p149, %p150
      %p152 = scmp.ne.s32.totalorder %s140, %s141
      %p153 = scmp.eq.s32.totalorder %s26, 1
      %p154 = por %p152, %p153
      %p156 = scmp.ne.s32.totalorder %s141, %s155
      %p157 = scmp.eq.s32.totalorder %s26, 0
      %p158 = por %p156, %p157
      %s160 = sadd.s32 %s159, 1
      %p163 = scmp.eq.s32.totalorder %s20, 1
      %p164 = scmp.ne.s32.totalorder %s159, %s161
      %p165 = scmp.eq.s32.totalorder %s20, 0
      %p166 = por %p164, %p165
      %p167 = scmp.ne.s32.totalorder %s159, %s161
      %p168 = scmp.eq.s32.totalorder %s25, 1
      %p169 = por %p167, %p168
      %p170 = scmp.ne.s32.totalorder %s161, %s162
      %p171 = scmp.eq.s32.totalorder %s25, 0
      %p172 = por %p170, %p171
      %p173 = scmp.ne.s32.totalorder %s161, %s162
      %p174 = scmp.eq.s32.totalorder %s26, 1
      %p175 = por %p173, %p174
      %p177 = scmp.ne.s32.totalorder %s162, %s176
      %p178 = scmp.eq.s32.totalorder %s26, 0
      %p179 = por %p177, %p178
      %s181 = sadd.s32 %s180, 1
      %p184 = scmp.eq.s32.totalorder %s20, 1
      %p185 = scmp.ne.s32.totalorder %s180, %s182
      %p186 = scmp.eq.s32.totalorder %s20, 0
      %p187 = por %p185, %p186
      %p188 = scmp.ne.s32.totalorder %s180, %s182
      %p189 = scmp.eq.s32.totalorder %s25, 1
      %p190 = por %p188, %p189
      %p191 = scmp.ne.s32.totalorder %s182, %s183
      %p192 = scmp.eq.s32.totalorder %s25, 0
      %p193 = por %p191, %p192
      %p194 = scmp.ne.s32.totalorder %s182, %s183
      %p195 = scmp.eq.s32.totalorder %s26, 1
      %p196 = por %p194, %p195
      %p198 = scmp.ne.s32.totalorder %s183, %s197
      %p199 = scmp.eq.s32.totalorder %s26, 0
      %p200 = por %p198, %p199
      %s202 = sadd.s32 %s201, 1
      %p205 = scmp.eq.s32.totalorder %s20, 1
      %p206 = scmp.ne.s32.totalorder %s201, %s203
      %p207 = scmp.eq.s32.totalorder %s20, 0
      %p208 = por %p206, %p207
      %p209 = scmp.ne.s32.totalorder %s201, %s203
      %p210 = scmp.eq.s32.totalorder %s25, 1
      %p211 = por %p209, %p210
      %p212 = scmp.ne.s32.totalorder %s203, %s204
      %p213 = scmp.eq.s32.totalorder %s25, 0
      %p214 = por %p212, %p213
      %p215 = scmp.ne.s32.totalorder %s203, %s204
      %p216 = scmp.eq.s32.totalorder %s26, 1
      %p217 = por %p215, %p216
      %p219 = scmp.ne.s32.totalorder %s204, %s218
      %p220 = scmp.eq.s32.totalorder %s26, 0
      %p221 = por %p219, %p220
      %s223 = sadd.s32 %s222, 1
      %p226 = scmp.eq.s32.totalorder %s20, 1
      %p227 = scmp.ne.s32.totalorder %s222, %s224
      %p228 = scmp.eq.s32.totalorder %s20, 0
      %p229 = por %p227, %p228
      %p230 = scmp.ne.s32.totalorder %s222, %s224
      %p231 = scmp.eq.s32.totalorder %s25, 1
      %p232 = por %p230, %p231
      %p233 = scmp.ne.s32.totalorder %s224, %s225
      %p234 = scmp.eq.s32.totalorder %s25, 0
      %p235 = por %p233, %p234
      %p236 = scmp.ne.s32.totalorder %s224, %s225
      %p237 = scmp.eq.s32.totalorder %s26, 1
      %p238 = por %p236, %p237
      %p240 = scmp.ne.s32.totalorder %s225, %s239
      %p241 = scmp.eq.s32.totalorder %s26, 0
      %p242 = por %p240, %p241
      %s244 = sadd.s32 %s243, 1
      %p247 = scmp.eq.s32.totalorder %s20, 1
      %p248 = scmp.ne.s32.totalorder %s243, %s245
      %p249 = scmp.eq.s32.totalorder %s20, 0
      %p250 = por %p248, %p249
      %p251 = scmp.ne.s32.totalorder %s243, %s245
      %p252 = scmp.eq.s32.totalorder %s25, 1
      %p253 = por %p251, %p252
      %p254 = scmp.ne.s32.totalorder %s245, %s246
      %p255 = scmp.eq.s32.totalorder %s25, 0
      %p256 = por %p254, %p255
      %p257 = scmp.ne.s32.totalorder %s245, %s246
      %p258 = scmp.eq.s32.totalorder %s26, 1
      %p259 = por %p257, %p258
      %p261 = scmp.ne.s32.totalorder %s246, %s260
      %p262 = scmp.eq.s32.totalorder %s26, 0
      %p263 = por %p261, %p262
      %s264 = ssub.s32 %s20, %s27
      %p265 = scmp.eq.s32.totalorder %s264, 0
      %s267 = sadd.s32 %s266, 1
      %s268 = scalar_select %p265, %s266, %s267
      %p271 = pneg %p265
      %p272 = scmp.eq.s32.totalorder %s20, 1
      %p273 = por %p271, %p272
      %p274 = scmp.ne.s32.totalorder %s266, %s269
      %p275 = scmp.eq.s32.totalorder %s20, 0
      %p276 = por %p274, %p275
      %p277 = scmp.ne.s32.totalorder %s266, %s269
      %p278 = scmp.eq.s32.totalorder %s25, 1
      %p279 = por %p277, %p278
      %p280 = scmp.ne.s32.totalorder %s269, %s270
      %p281 = scmp.eq.s32.totalorder %s25, 0
      %p282 = por %p280, %p281
      %p283 = scmp.ne.s32.totalorder %s269, %s270
      %p284 = scmp.eq.s32.totalorder %s26, 1
      %p285 = por %p283, %p284
      %p287 = scmp.ne.s32.totalorder %s270, %s286
      %p288 = scmp.eq.s32.totalorder %s26, 0
      %p289 = por %p287, %p288
      %p290 = scmp.le.s32.totalorder 1, %s20
      %p291 = scmp.lt.s32.totalorder %s20, 3
      %p292 = pnand %p290, %p291
      %p293 = pneg %p292
      // Predicated region
      $region9: #{tpu_custom_call.1} parent=5 // pred_check
        _
      $region10: #{tpu_custom_call.1} parent=5 // pred_check_branch
        %295 = sbr.rel (%p292) target = $region12
      $region11: #{tpu_custom_call.1} parent=5 // pred_region
        %s296 = ssub.s32 %s20, 1
        // Predicated region
        $region13: #{tpu_custom_call.1} parent=11 // pred_check
          %p297 = pneg %p67
        $region14: #{tpu_custom_call.1} parent=11 // pred_check_branch
          %299 = sbr.rel (%p297) target = $region16
        $region15: #{tpu_custom_call.1} parent=11 // pred_region
          _
        $region16: #{tpu_custom_call.1} parent=11 // pred_fallthru
          _
        // Predicated region
        $region17: #{tpu_custom_call.1} parent=11 // pred_check
          %p300 = pneg %p88
        $region18: #{tpu_custom_call.1} parent=11 // pred_check_branch
          %302 = sbr.rel (%p300) target = $region20
        $region19: #{tpu_custom_call.1} parent=11 // pred_region
          _
        $region20: #{tpu_custom_call.1} parent=11 // pred_fallthru
          _
        // Predicated region
        $region21: #{tpu_custom_call.1} parent=11 // pred_check
          %p303 = pneg %p109
        $region22: #{tpu_custom_call.1} parent=11 // pred_check_branch
          %305 = sbr.rel (%p303) target = $region24
        $region23: #{tpu_custom_call.1} parent=11 // pred_region
          %307 = vsyncadd [#allocation3], 0
          %s308 = sshll.u32 %s3, 4
          %s309 = int_to_ptr.hbm [resolvable:$true] %s308
          %s310 = sshll.u32 [#allocation2], 4
          %s311 = int_to_ptr.vmem [resolvable:$true] %s310
          %316 = dma.hbm_to_vmem [thread:$0]  %s309, 1024, %s311, [#allocation3], 64, 64, 4
        $region24: #{tpu_custom_call.1} parent=11 // pred_fallthru
          _
        // Predicated region
        $region25: #{tpu_custom_call.1} parent=11 // pred_check
          %p317 = pneg %p130
        $region26: #{tpu_custom_call.1} parent=11 // pred_check_branch
          %319 = sbr.rel (%p317) target = $region28
        $region27: #{tpu_custom_call.1} parent=11 // pred_region
          _
        $region28: #{tpu_custom_call.1} parent=11 // pred_fallthru
          _
        // Predicated region
        $region29: #{tpu_custom_call.1} parent=11 // pred_check
          %p320 = pneg %p151
        $region30: #{tpu_custom_call.1} parent=11 // pred_check_branch
          %322 = sbr.rel (%p320) target = $region32
        $region31: #{tpu_custom_call.1} parent=11 // pred_region
          %324 = vsyncadd [#allocation5], 0
          %s325 = sshll.u32 %s5, 4
          %s326 = int_to_ptr.hbm [resolvable:$true] %s325
          %s327 = sshll.u32 [#allocation4], 4
          %s328 = int_to_ptr.vmem [resolvable:$true] %s327
          %333 = dma.hbm_to_vmem [thread:$0]  %s326, 1024, %s328, [#allocation5], 64, 64, 4
        $region32: #{tpu_custom_call.1} parent=11 // pred_fallthru
          _
        // Predicated region
        $region33: #{tpu_custom_call.1} parent=11 // pred_check
          %p334 = pneg %p172
        $region34: #{tpu_custom_call.1} parent=11 // pred_check_branch
          %336 = sbr.rel (%p334) target = $region36
        $region35: #{tpu_custom_call.1} parent=11 // pred_region
          _
        $region36: #{tpu_custom_call.1} parent=11 // pred_fallthru
          _
        // Predicated region
        $region37: #{tpu_custom_call.1} parent=11 // pred_check
          %p337 = pneg %p193
        $region38: #{tpu_custom_call.1} parent=11 // pred_check_branch
          %339 = sbr.rel (%p337) target = $region40
        $region39: #{tpu_custom_call.1} parent=11 // pred_region
          %341 = vsyncadd [#allocation5], 0
          %s342 = sshll.u32 %s7, 4
          %s343 = int_to_ptr.hbm [resolvable:$true] %s342
          %s344 = sshll.u32 [#allocation6], 4
          %s345 = int_to_ptr.vmem [resolvable:$true] %s344
          %350 = dma.hbm_to_vmem [thread:$0]  %s343, 1024, %s345, [#allocation5], 64, 64, 4
        $region40: #{tpu_custom_call.1} parent=11 // pred_fallthru
          _
        // Predicated region
        $region41: #{tpu_custom_call.1} parent=11 // pred_check
          %p351 = pneg %p214
        $region42: #{tpu_custom_call.1} parent=11 // pred_check_branch
          %353 = sbr.rel (%p351) target = $region44
        $region43: #{tpu_custom_call.1} parent=11 // pred_region
          _
        $region44: #{tpu_custom_call.1} parent=11 // pred_fallthru
          _
        // Predicated region
        $region45: #{tpu_custom_call.1} parent=11 // pred_check
          %p354 = pneg %p235
        $region46: #{tpu_custom_call.1} parent=11 // pred_check_branch
          %356 = sbr.rel (%p354) target = $region48
        $region47: #{tpu_custom_call.1} parent=11 // pred_region
          %358 = vsyncadd [#allocation8], 0
          %s359 = sshll.u32 %s9, 4
          %s360 = int_to_ptr.hbm [resolvable:$true] %s359
          %s361 = sshll.u32 [#allocation7], 4
          %s362 = int_to_ptr.vmem [resolvable:$true] %s361
          %367 = dma.hbm_to_vmem [thread:$0]  %s360, 1024, %s362, [#allocation8], 64, 64, 4
        $region48: #{tpu_custom_call.1} parent=11 // pred_fallthru
          _
        // Predicated region
        $region49: #{tpu_custom_call.1} parent=11 // pred_check
          %p368 = pneg %p256
        $region50: #{tpu_custom_call.1} parent=11 // pred_check_branch
          %370 = sbr.rel (%p368) target = $region52
        $region51: #{tpu_custom_call.1} parent=11 // pred_region
          _
        $region52: #{tpu_custom_call.1} parent=11 // pred_fallthru
          _
      $region12: #{tpu_custom_call.1} parent=5 // pred_fallthru
        _
      %p371 = scmp.lt.s32.totalorder %s20, 2
      // Predicated region
      $region53: #{tpu_custom_call.1} parent=5 // pred_check
        %p372 = pneg %p371
      $region54: #{tpu_custom_call.1} parent=5 // pred_check_branch
        %374 = sbr.rel (%p372) target = $region56
      $region55: #{tpu_custom_call.1} parent=5 // pred_region
        // Predicated region
        $region57: #{tpu_custom_call.1} parent=55 // pred_check
          %p375 = pneg %p40
        $region58: #{tpu_custom_call.1} parent=55 // pred_check_branch
          %377 = sbr.rel (%p375) target = $region60
        $region59: #{tpu_custom_call.1} parent=55 // pred_region
          %s378 = smul.u32 4, %s20
          %p379 = scmp.lt.s32.totalorder %s378, 7
          %s380 = scalar_select %p379, %s378, 7
          %s381 = smul.addr %s380, 4
          %s382 = scalar_lea.vmem %s0, %s381
          %s383 = smul.u32 4, %s20
        $region60: #{tpu_custom_call.1} parent=55 // pred_fallthru
          _
      $region56: #{tpu_custom_call.1} parent=5 // pred_fallthru
        _
      %p384 = scmp.le.s32.totalorder 1, %s20
      %p385 = scmp.lt.s32.totalorder %s20, 3
      %p386 = pnand %p384, %p385
      %p387 = pneg %p386
      // Predicated region
      $region61: #{tpu_custom_call.1} parent=5 // pred_check
        _
      $region62: #{tpu_custom_call.1} parent=5 // pred_check_branch
        %389 = sbr.rel (%p386) target = $region64
      $region63: #{tpu_custom_call.1} parent=5 // pred_region
        %s390 = ssub.s32 %s20, 1
        // Predicated region
        $region65: #{tpu_custom_call.1} parent=63 // pred_check
          %p391 = pneg %p109
        $region66: #{tpu_custom_call.1} parent=63 // pred_check_branch
          %393 = sbr.rel (%p391) target = $region68
        $region67: #{tpu_custom_call.1} parent=63 // pred_region
          %395 = dma.done [#allocation3], 1024
        $region68: #{tpu_custom_call.1} parent=63 // pred_fallthru
          _
        // Predicated region
        $region69: #{tpu_custom_call.1} parent=63 // pred_check
          %p396 = pneg %p151
        $region70: #{tpu_custom_call.1} parent=63 // pred_check_branch
          %398 = sbr.rel (%p396) target = $region72
        $region71: #{tpu_custom_call.1} parent=63 // pred_region
          %400 = dma.done [#allocation5], 1024
        $region72: #{tpu_custom_call.1} parent=63 // pred_fallthru
          _
        // Predicated region
        $region73: #{tpu_custom_call.1} parent=63 // pred_check
          %p401 = pneg %p193
        $region74: #{tpu_custom_call.1} parent=63 // pred_check_branch
          %403 = sbr.rel (%p401) target = $region76
        $region75: #{tpu_custom_call.1} parent=63 // pred_region
          %405 = dma.done [#allocation5], 1024
        $region76: #{tpu_custom_call.1} parent=63 // pred_fallthru
          _
        // Predicated region
        $region77: #{tpu_custom_call.1} parent=63 // pred_check
          %p406 = pneg %p235
        $region78: #{tpu_custom_call.1} parent=63 // pred_check_branch
          %408 = sbr.rel (%p406) target = $region80
        $region79: #{tpu_custom_call.1} parent=63 // pred_region
          %410 = dma.done [#allocation8], 1024
        $region80: #{tpu_custom_call.1} parent=63 // pred_fallthru
          _
        %s411 = smul.u32 4, %s25
        %p412 = scmp.lt.s32.totalorder %s411, 7
        %s413 = scalar_select %p412, %s411, 7
        %s414 = smul.addr %s413, 4
        %s415 = scalar_lea.vmem %s0, %s414
        %p416 = pneg %p46
        %p417 = pneg %p43
        %p418 = pneg %p67
        %p419 = pneg %p64
        %p420 = pneg %p88
        %p421 = pneg %p85
        %p422 = pneg %p109
        %p423 = pneg %p106
        %p424 = pneg %p130
        %p425 = pneg %p127
        %p426 = pneg %p151
        %p427 = pneg %p148
        %p428 = pneg %p172
        %p429 = pneg %p169
        %p430 = pneg %p193
        %p431 = pneg %p190
        %p432 = pneg %p214
        %p433 = pneg %p211
        %p434 = pneg %p235
        %p435 = pneg %p232
        %p436 = pneg %p256
        %p437 = pneg %p253
        %p438 = pneg %p282
        %p439 = pneg %p279
        %s440 = smul.u32 4, %s25
        %p441 = scmp.lt.s32.totalorder %s440, 7
        %s442 = scalar_select %p441, %s440, 7
        %s443 = smul.addr %s442, 8
        %s444 = scalar_lea.vmem %s11, %s443
        %s445 = smul.u32 4, %s25
        %p446 = scmp.lt.s32.totalorder %s445, 7
        %s447 = scalar_select %p446, %s445, 7
        %s448 = smul.addr %s447, 4
        %s449 = scalar_lea.vmem %s0, %s448
        %s450 = smul.u32 4, %s25
        %s451 = smul.u32 4, %s25
        %p452 = scmp.lt.s32.totalorder %s451, 7
        %s453 = scalar_select %p452, %s451, 7
        %s454 = smul.addr %s453, 8
        %s455 = scalar_lea.vmem %s11, %s454
        %s456 = smul.u32 4, %s25
        %v458 = vld [vmem:[%s449] sm:$0xf]
        %v459 = vld [vmem:[%s449 + $0x4] sm:$0xf]
        %v460 = vld [vmem:[%s449 + $0x8] sm:$0xf]
        %v461 = vld [vmem:[%s449 + $0xc] sm:$0xf]
        %v462 = vld [vmem:[%s1] sm:$0xf]
        %v463 = vld [vmem:[%s1 + $0x4] sm:$0xf]
        %v464 = vld [vmem:[%s1 + $0x8] sm:$0xf]
        %v465 = vld [vmem:[%s1 + $0xc] sm:$0xf]
        %v466 = vld [vmem:[%s2] sm:$0x1]
        %v468 = vperm.slane %v466, 0
        %v474 = vunpack.c.l.b16 %v458
        %v475 = vunpack.c.l.b16 %v459
        %v476 = vunpack.c.l.b16 %v460
        %v477 = vunpack.c.l.b16 %v461
        %v478 = vpack.c.b16 %v475, %v474
        %v479 = vpack.c.b16 %v477, %v476
        %v484 = vunpack.c.l.b16 %v462
        %v485 = vunpack.c.l.b16 %v463
        %v486 = vunpack.c.l.b16 %v464
        %v487 = vunpack.c.l.b16 %v465
        %v488 = vpack.c.b16 %v485, %v484
        %v489 = vpack.c.b16 %v487, %v486
        %vm492 = vcmask 261120
        %v494 = vsel %vm492, %v478, 0
        %v497 = vsel %vm492, %v479, 0
        %499 = vmatpush.bf16.msra.mxu0 0
        %500 = vmatpush.bf16.msra.mxu0 0
        %501 = vmatpush.bf16.msra.mxu0 0
        %502 = vmatpush.bf16.msra.mxu0 0
        %503 = vmatpush.bf16.msra.mxu0 0
        %504 = vmatpush.bf16.msra.mxu0 0
        %505 = vmatpush.bf16.msra.mxu0 %v489
        %506 = vmatpush.bf16.msra.mxu0 %v488
        %507 = vmatmul.bf16.gmra.mxu0 %v494
        %v508 = vpop.f32.mrf.mxu0
        %v509 = vadd.f32 %v468, %v508
        %v510 = vpop.f32.mrf.mxu0
        %v511 = vadd.f32 %v468, %v510
        %512 = vmatmul.bf16.gmra.mxu0 %v497
        %v513 = vpop.f32.mrf.mxu0
        %v514 = vadd.f32 %v468, %v513
        %v515 = vpop.f32.mrf.mxu0
        %v516 = vadd.f32 %v468, %v515
        %517 = vdwg.mxu0
        %v518 = vmax.f32 %v509, 0.0
        %v519 = vmax.f32 %v511, 0.0
        %v520 = vmax.f32 %v514, 0.0
        %v521 = vmax.f32 %v516, 0.0
        %v522 = vpack.c.bf16 %v519, %v518
        %v523 = vpack.c.bf16 %v521, %v520
        %v524 = vld [vmem:[#allocation2] sm:$0xf]
        %v525 = vld [vmem:[#allocation2 + $0x4] sm:$0xf]
        %v526 = vld [vmem:[#allocation2 + $0x8] sm:$0xf]
        %v527 = vld [vmem:[#allocation2 + $0xc] sm:$0xf]
        %v528 = vld [vmem:[#allocation2 + $0x10] sm:$0xf]
        %v529 = vld [vmem:[#allocation2 + $0x14] sm:$0xf]
        %v530 = vld [vmem:[#allocation2 + $0x18] sm:$0xf]
        %v531 = vld [vmem:[#allocation2 + $0x1c] sm:$0xf]
        %v532 = vld [vmem:[#allocation2 + $0x20] sm:$0xf]
        %v533 = vld [vmem:[#allocation2 + $0x24] sm:$0xf]
        %v534 = vld [vmem:[#allocation2 + $0x28] sm:$0xf]
        %v535 = vld [vmem:[#allocation2 + $0x2c] sm:$0xf]
        %v536 = vld [vmem:[#allocation2 + $0x30] sm:$0xf]
        %v537 = vld [vmem:[#allocation2 + $0x34] sm:$0xf]
        %v538 = vld [vmem:[#allocation2 + $0x38] sm:$0xf]
        %v539 = vld [vmem:[#allocation2 + $0x3c] sm:$0xf]
        %v540 = vld [vmem:[%s4] sm:$0x1]
        %v542 = vperm.slane %v540, 0
        %v560 = vunpack.c.l.b16 %v524
        %v561 = vunpack.c.l.b16 %v525
        %v562 = vunpack.c.l.b16 %v526
        %v563 = vunpack.c.l.b16 %v527
        %v564 = vunpack.c.l.b16 %v528
        %v565 = vunpack.c.l.b16 %v529
        %v566 = vunpack.c.l.b16 %v530
        %v567 = vunpack.c.l.b16 %v531
        %v568 = vunpack.c.l.b16 %v532
        %v569 = vunpack.c.l.b16 %v533
        %v570 = vunpack.c.l.b16 %v534
        %v571 = vunpack.c.l.b16 %v535
        %v572 = vunpack.c.l.b16 %v536
        %v573 = vunpack.c.l.b16 %v537
        %v574 = vunpack.c.l.b16 %v538
        %v575 = vunpack.c.l.b16 %v539
        %v576 = vpack.c.b16 %v561, %v560
        %v577 = vpack.c.b16 %v563, %v562
        %v578 = vpack.c.b16 %v565, %v564
        %v579 = vpack.c.b16 %v567, %v566
        %v580 = vpack.c.b16 %v569, %v568
        %v581 = vpack.c.b16 %v571, %v570
        %v582 = vpack.c.b16 %v573, %v572
        %v583 = vpack.c.b16 %v575, %v574
        %592 = vmatpush.bf16.msra.mxu0 %v583
        %593 = vmatpush.bf16.msra.mxu0 %v582
        %594 = vmatpush.bf16.msra.mxu0 %v581
        %595 = vmatpush.bf16.msra.mxu0 %v580
        %596 = vmatpush.bf16.msra.mxu0 %v579
        %597 = vmatpush.bf16.msra.mxu0 %v578
        %598 = vmatpush.bf16.msra.mxu0 %v577
        %599 = vmatpush.bf16.msra.mxu0 %v576
        %600 = vmatmul.bf16.gmra.mxu0 %v522
        %v601 = vpop.f32.mrf.mxu0
        %v602 = vadd.f32 %v542, %v601
        %v603 = vpop.f32.mrf.mxu0
        %v604 = vadd.f32 %v542, %v603
        %605 = vmatmul.bf16.gmra.mxu0 %v523
        %v606 = vpop.f32.mrf.mxu0
        %v607 = vadd.f32 %v542, %v606
        %v608 = vpop.f32.mrf.mxu0
        %v609 = vadd.f32 %v542, %v608
        %610 = vdwg.mxu0
        %v611 = vmax.f32 %v602, 0.0
        %v612 = vmax.f32 %v604, 0.0
        %v613 = vmax.f32 %v607, 0.0
        %v614 = vmax.f32 %v609, 0.0
        %v615 = vpack.c.bf16 %v612, %v611
        %v616 = vpack.c.bf16 %v614, %v613
        %v617 = vld [vmem:[#allocation4] sm:$0xf]
        %v618 = vld [vmem:[#allocation4 + $0x4] sm:$0xf]
        %v619 = vld [vmem:[#allocation4 + $0x8] sm:$0xf]
        %v620 = vld [vmem:[#allocation4 + $0xc] sm:$0xf]
        %v621 = vld [vmem:[#allocation4 + $0x10] sm:$0xf]
        %v622 = vld [vmem:[#allocation4 + $0x14] sm:$0xf]
        %v623 = vld [vmem:[#allocation4 + $0x18] sm:$0xf]
        %v624 = vld [vmem:[#allocation4 + $0x1c] sm:$0xf]
        %v625 = vld [vmem:[#allocation4 + $0x20] sm:$0xf]
        %v626 = vld [vmem:[#allocation4 + $0x24] sm:$0xf]
        %v627 = vld [vmem:[#allocation4 + $0x28] sm:$0xf]
        %v628 = vld [vmem:[#allocation4 + $0x2c] sm:$0xf]
        %v629 = vld [vmem:[#allocation4 + $0x30] sm:$0xf]
        %v630 = vld [vmem:[#allocation4 + $0x34] sm:$0xf]
        %v631 = vld [vmem:[#allocation4 + $0x38] sm:$0xf]
        %v632 = vld [vmem:[#allocation4 + $0x3c] sm:$0xf]
        %v633 = vld [vmem:[%s6] sm:$0x1]
        %v635 = vperm.slane %v633, 0
        %v653 = vunpack.c.l.b16 %v617
        %v654 = vunpack.c.l.b16 %v618
        %v655 = vunpack.c.l.b16 %v619
        %v656 = vunpack.c.l.b16 %v620
        %v657 = vunpack.c.l.b16 %v621
        %v658 = vunpack.c.l.b16 %v622
        %v659 = vunpack.c.l.b16 %v623
        %v660 = vunpack.c.l.b16 %v624
        %v661 = vunpack.c.l.b16 %v625
        %v662 = vunpack.c.l.b16 %v626
        %v663 = vunpack.c.l.b16 %v627
        %v664 = vunpack.c.l.b16 %v628
        %v665 = vunpack.c.l.b16 %v629
        %v666 = vunpack.c.l.b16 %v630
        %v667 = vunpack.c.l.b16 %v631
        %v668 = vunpack.c.l.b16 %v632
        %v669 = vpack.c.b16 %v654, %v653
        %v670 = vpack.c.b16 %v656, %v655
        %v671 = vpack.c.b16 %v658, %v657
        %v672 = vpack.c.b16 %v660, %v659
        %v673 = vpack.c.b16 %v662, %v661
        %v674 = vpack.c.b16 %v664, %v663
        %v675 = vpack.c.b16 %v666, %v665
        %v676 = vpack.c.b16 %v668, %v667
        %685 = vmatpush.bf16.msra.mxu0 %v676
        %686 = vmatpush.bf16.msra.mxu0 %v675
        %687 = vmatpush.bf16.msra.mxu0 %v674
        %688 = vmatpush.bf16.msra.mxu0 %v673
        %689 = vmatpush.bf16.msra.mxu0 %v672
        %690 = vmatpush.bf16.msra.mxu0 %v671
        %691 = vmatpush.bf16.msra.mxu0 %v670
        %692 = vmatpush.bf16.msra.mxu0 %v669
        %693 = vmatmul.bf16.gmra.mxu0 %v615
        %v694 = vpop.f32.mrf.mxu0
        %v695 = vadd.f32 %v635, %v694
        %v696 = vpop.f32.mrf.mxu0
        %v697 = vadd.f32 %v635, %v696
        %698 = vmatmul.bf16.gmra.mxu0 %v616
        %v699 = vpop.f32.mrf.mxu0
        %v700 = vadd.f32 %v635, %v699
        %v701 = vpop.f32.mrf.mxu0
        %v702 = vadd.f32 %v635, %v701
        %703 = vdwg.mxu0
        %v704 = vmax.f32 %v695, 0.0
        %v705 = vmax.f32 %v697, 0.0
        %v706 = vmax.f32 %v700, 0.0
        %v707 = vmax.f32 %v702, 0.0
        %v708 = vpack.c.bf16 %v705, %v704
        %v709 = vpack.c.bf16 %v707, %v706
        %v710 = vld [vmem:[#allocation6] sm:$0xf]
        %v711 = vld [vmem:[#allocation6 + $0x4] sm:$0xf]
        %v712 = vld [vmem:[#allocation6 + $0x8] sm:$0xf]
        %v713 = vld [vmem:[#allocation6 + $0xc] sm:$0xf]
        %v714 = vld [vmem:[#allocation6 + $0x10] sm:$0xf]
        %v715 = vld [vmem:[#allocation6 + $0x14] sm:$0xf]
        %v716 = vld [vmem:[#allocation6 + $0x18] sm:$0xf]
        %v717 = vld [vmem:[#allocation6 + $0x1c] sm:$0xf]
        %v718 = vld [vmem:[#allocation6 + $0x20] sm:$0xf]
        %v719 = vld [vmem:[#allocation6 + $0x24] sm:$0xf]
        %v720 = vld [vmem:[#allocation6 + $0x28] sm:$0xf]
        %v721 = vld [vmem:[#allocation6 + $0x2c] sm:$0xf]
        %v722 = vld [vmem:[#allocation6 + $0x30] sm:$0xf]
        %v723 = vld [vmem:[#allocation6 + $0x34] sm:$0xf]
        %v724 = vld [vmem:[#allocation6 + $0x38] sm:$0xf]
        %v725 = vld [vmem:[#allocation6 + $0x3c] sm:$0xf]
        %v726 = vld [vmem:[%s8] sm:$0x1]
        %v728 = vperm.slane %v726, 0
        %v746 = vunpack.c.l.b16 %v710
        %v747 = vunpack.c.l.b16 %v711
        %v748 = vunpack.c.l.b16 %v712
        %v749 = vunpack.c.l.b16 %v713
        %v750 = vunpack.c.l.b16 %v714
        %v751 = vunpack.c.l.b16 %v715
        %v752 = vunpack.c.l.b16 %v716
        %v753 = vunpack.c.l.b16 %v717
        %v754 = vunpack.c.l.b16 %v718
        %v755 = vunpack.c.l.b16 %v719
        %v756 = vunpack.c.l.b16 %v720
        %v757 = vunpack.c.l.b16 %v721
        %v758 = vunpack.c.l.b16 %v722
        %v759 = vunpack.c.l.b16 %v723
        %v760 = vunpack.c.l.b16 %v724
        %v761 = vunpack.c.l.b16 %v725
        %v762 = vpack.c.b16 %v747, %v746
        %v763 = vpack.c.b16 %v749, %v748
        %v764 = vpack.c.b16 %v751, %v750
        %v765 = vpack.c.b16 %v753, %v752
        %v766 = vpack.c.b16 %v755, %v754
        %v767 = vpack.c.b16 %v757, %v756
        %v768 = vpack.c.b16 %v759, %v758
        %v769 = vpack.c.b16 %v761, %v760
        %778 = vmatpush.bf16.msra.mxu0 %v769
        %779 = vmatpush.bf16.msra.mxu0 %v768
        %780 = vmatpush.bf16.msra.mxu0 %v767
        %781 = vmatpush.bf16.msra.mxu0 %v766
        %782 = vmatpush.bf16.msra.mxu0 %v765
        %783 = vmatpush.bf16.msra.mxu0 %v764
        %784 = vmatpush.bf16.msra.mxu0 %v763
        %785 = vmatpush.bf16.msra.mxu0 %v762
        %786 = vmatmul.bf16.gmra.mxu0 %v708
        %v787 = vpop.f32.mrf.mxu0
        %v788 = vadd.f32 %v728, %v787
        %v789 = vpop.f32.mrf.mxu0
        %v790 = vadd.f32 %v728, %v789
        %791 = vmatmul.bf16.gmra.mxu0 %v709
        %v792 = vpop.f32.mrf.mxu0
        %v793 = vadd.f32 %v728, %v792
        %v794 = vpop.f32.mrf.mxu0
        %v795 = vadd.f32 %v728, %v794
        %796 = vdwg.mxu0
        %v797 = vmax.f32 %v788, 0.0
        %v798 = vmax.f32 %v790, 0.0
        %v799 = vmax.f32 %v793, 0.0
        %v800 = vmax.f32 %v795, 0.0
        %v801 = vpack.c.bf16 %v798, %v797
        %v802 = vpack.c.bf16 %v800, %v799
        %v803 = vld [vmem:[#allocation7] sm:$0xf]
        %v804 = vld [vmem:[#allocation7 + $0x4] sm:$0xf]
        %v805 = vld [vmem:[#allocation7 + $0x8] sm:$0xf]
        %v806 = vld [vmem:[#allocation7 + $0xc] sm:$0xf]
        %v807 = vld [vmem:[#allocation7 + $0x10] sm:$0xf]
        %v808 = vld [vmem:[#allocation7 + $0x14] sm:$0xf]
        %v809 = vld [vmem:[#allocation7 + $0x18] sm:$0xf]
        %v810 = vld [vmem:[#allocation7 + $0x1c] sm:$0xf]
        %v811 = vld [vmem:[#allocation7 + $0x20] sm:$0xf]
        %v812 = vld [vmem:[#allocation7 + $0x24] sm:$0xf]
        %v813 = vld [vmem:[#allocation7 + $0x28] sm:$0xf]
        %v814 = vld [vmem:[#allocation7 + $0x2c] sm:$0xf]
        %v815 = vld [vmem:[#allocation7 + $0x30] sm:$0xf]
        %v816 = vld [vmem:[#allocation7 + $0x34] sm:$0xf]
        %v817 = vld [vmem:[#allocation7 + $0x38] sm:$0xf]
        %v818 = vld [vmem:[#allocation7 + $0x3c] sm:$0xf]
        %v819 = vld [vmem:[%s10] sm:$0x1]
        %v821 = vperm.slane %v819, 0
        %v839 = vunpack.c.l.b16 %v803
        %v840 = vunpack.c.l.b16 %v804
        %v841 = vunpack.c.l.b16 %v805
        %v842 = vunpack.c.l.b16 %v806
        %v843 = vunpack.c.l.b16 %v807
        %v844 = vunpack.c.l.b16 %v808
        %v845 = vunpack.c.l.b16 %v809
        %v846 = vunpack.c.l.b16 %v810
        %v847 = vunpack.c.l.b16 %v811
        %v848 = vunpack.c.l.b16 %v812
        %v849 = vunpack.c.l.b16 %v813
        %v850 = vunpack.c.l.b16 %v814
        %v851 = vunpack.c.l.b16 %v815
        %v852 = vunpack.c.l.b16 %v816
        %v853 = vunpack.c.l.b16 %v817
        %v854 = vunpack.c.l.b16 %v818
        %v855 = vpack.c.b16 %v840, %v839
        %v856 = vpack.c.b16 %v842, %v841
        %v857 = vpack.c.b16 %v844, %v843
        %v858 = vpack.c.b16 %v846, %v845
        %v859 = vpack.c.b16 %v848, %v847
        %v860 = vpack.c.b16 %v850, %v849
        %v861 = vpack.c.b16 %v852, %v851
        %v862 = vpack.c.b16 %v854, %v853
        %871 = vmatpush.bf16.msra.mxu0 %v862
        %872 = vmatpush.bf16.msra.mxu0 %v861
        %873 = vmatpush.bf16.msra.mxu0 %v860
        %874 = vmatpush.bf16.msra.mxu0 %v859
        %875 = vmatpush.bf16.msra.mxu0 %v858
        %876 = vmatpush.bf16.msra.mxu0 %v857
        %877 = vmatpush.bf16.msra.mxu0 %v856
        %878 = vmatpush.bf16.msra.mxu0 %v855
        %879 = vmatmul.bf16.gmra.mxu0 %v801
        %v880 = vpop.f32.mrf.mxu0
        %v881 = vadd.f32 %v821, %v880
        %v882 = vpop.f32.mrf.mxu0
        %v883 = vadd.f32 %v821, %v882
        %884 = vmatmul.bf16.gmra.mxu0 %v802
        %v885 = vpop.f32.mrf.mxu0
        %v886 = vadd.f32 %v821, %v885
        %v887 = vpop.f32.mrf.mxu0
        %v888 = vadd.f32 %v821, %v887
        %889 = vdwg.mxu0
        %vm890 = vcmask 7168
        %891 = vst.msk [vmem:[%s455] sm:$0xff] %vm890, %v881
        %892 = vst.msk [vmem:[%s455 + $0x8] sm:$0xff] %vm890, %v883
        %893 = vst.msk [vmem:[%s455 + $0x10] sm:$0xff] %vm890, %v886
        %894 = vst.msk [vmem:[%s455 + $0x18] sm:$0xff] %vm890, %v888
        %s895 = smul.u32 4, %s25
        %p896 = scmp.lt.s32.totalorder %s895, 7
        %s897 = scalar_select %p896, %s895, 7
        %s898 = smul.addr %s897, 8
        %s899 = scalar_lea.vmem %s11, %s898
        // Predicated region
        $region81: #{tpu_custom_call.1} parent=63 // pred_check
          %p900 = pneg %p279
        $region82: #{tpu_custom_call.1} parent=63 // pred_check_branch
          %902 = sbr.rel (%p900) target = $region84
        $region83: #{tpu_custom_call.1} parent=63 // pred_region
          %s903 = smul.u32 4, %s25
        $region84: #{tpu_custom_call.1} parent=63 // pred_fallthru
          _
      $region64: #{tpu_custom_call.1} parent=5 // pred_fallthru
        _
      %p904 = scmp.le.s32.totalorder 2, %s20
      // Predicated region
      $region85: #{tpu_custom_call.1} parent=5 // pred_check
        %p905 = pneg %p904
      $region86: #{tpu_custom_call.1} parent=5 // pred_check_branch
        %907 = sbr.rel (%p905) target = $region88
      $region87: #{tpu_custom_call.1} parent=5 // pred_region
        %s908 = ssub.s32 %s20, 2
        // Predicated region
        $region89: #{tpu_custom_call.1} parent=87 // pred_check
          %p909 = pneg %p285
        $region90: #{tpu_custom_call.1} parent=87 // pred_check_branch
          %911 = sbr.rel (%p909) target = $region92
        $region91: #{tpu_custom_call.1} parent=87 // pred_region
          %s912 = smul.u32 4, %s26
          %p913 = scmp.lt.s32.totalorder %s912, 7
          %s914 = scalar_select %p913, %s912, 7
          %s915 = smul.addr %s914, 8
          %s916 = scalar_lea.vmem %s11, %s915
        $region92: #{tpu_custom_call.1} parent=87 // pred_fallthru
          _
      $region88: #{tpu_custom_call.1} parent=5 // pred_fallthru
        _
    $region6: #{tpu_custom_call.1} parent=1 // loop_footer
      %s24 = sadd.s32 1, %s20
    $region7: #{tpu_custom_call.1} parent=1 // loop_footer_branch
      %19 = sbr.rel target = $region3
    $region8: #{tpu_custom_call.1} parent=1 // loop_exit
      _
    %917 = vsyncpa [#allocation3], 1
    %s918 = scalar_lea.sflag [#allocation3], 1
    %919 = vsyncpa %s918, 1
    %920 = vsyncpa [#allocation5], 1
    %921 = vsyncpa [#allocation8], 1

// kernel: tpu_custom_call.1
$region0: #{tpu_custom_call.1}
  #allocation0 [shape = 'u32[]', space=smem, size = 0x4, offset = 0x4, fixed_abs, tag = 'smem constant byte address 0x4 - core index']
  #allocation1 [shape = 'u32[72,128]{1,0:T(1,128)}', space=vmem, size = 0x9000, scoped, tag = 'internal scratch']
  %s0 = inlined_call_operand.vmem [shape: bf16[64,32], index: 0, kind: input, shape index: {}]
  %s1 = inlined_call_operand.vmem [shape: bf16[32,128], index: 1, kind: input, shape index: {}]
  %s2 = inlined_call_operand.vmem [shape: f32[1,128], index: 2, kind: input, shape index: {}]
  %s3 = inlined_call_operand.hbm [shape: bf16[128,128], index: 3, kind: input, shape index: {}]
  %s4 = inlined_call_operand.vmem [shape: f32[1,128], index: 4, kind: input, shape index: {}]
  %s5 = inlined_call_operand.hbm [shape: bf16[128,128], index: 5, kind: input, shape index: {}]
  %s6 = inlined_call_operand.vmem [shape: f32[1,128], index: 6, kind: input, shape index: {}]
  %s7 = inlined_call_operand.hbm [shape: bf16[128,128], index: 7, kind: input, shape index: {}]
  %s8 = inlined_call_operand.vmem [shape: f32[1,128], index: 8, kind: input, shape index: {}]
  %s9 = inlined_call_operand.hbm [shape: bf16[128,128], index: 9, kind: input, shape index: {}]
  %s10 = inlined_call_operand.vmem [shape: f32[1,128], index: 10, kind: input, shape index: {}]
  %s11 = inlined_call_operand.vmem [shape: f32[64,1], index: 11, kind: output, shape index: {}]
  %s12 = sld [smem:[#allocation0]]
  $region93: #{tpu_custom_call.1} parent=0
    _
  %s14 = ssub.s32 1, %s12
  %s15 = scalar_select 0, %s14, %s12
  $region1: #{tpu_custom_call.1} parent=0
    #allocation2 [shape = 'u8[32768]{0}', space=vmem, size = 0x8000, scoped, tag = 'input window, operand 3, single buffered']
    #allocation3 [shape = 's32[2]{0}', space=sflag, size = 0x8, scoped, tag = 'scoped memory for tpu_custom_call.1']
    #allocation4 [shape = 'u8[32768]{0}', space=vmem, size = 0x8000, scoped, tag = 'input window, operand 5, single buffered']
    #allocation5 [shape = 's32[1]{0}', space=sflag, size = 0x4, scoped, tag = 'scoped memory for tpu_custom_call.1']
    #allocation6 [shape = 'u8[32768]{0}', space=vmem, size = 0x8000, scoped, tag = 'input window, operand 7, single buffered']
    #allocation7 [shape = 'u8[32768]{0}', space=vmem, size = 0x8000, scoped, tag = 'input window, operand 9, single buffered']
    #allocation8 [shape = 's32[1]{0}', space=sflag, size = 0x4, scoped, tag = 'scoped memory for tpu_custom_call.1']
    %16 = vsyncpa [#allocation3], 0
    %17 = vsyncpa [#allocation5], 0
    %18 = vsyncpa [#allocation8], 0
    loop: start=0, step=1, limit=4
    $region2: #{tpu_custom_call.1} parent=1 // loop_pre_header
      _
    $region3: #{tpu_custom_call.1} parent=1 // loop_header
      %s20 = sphi 0, %s24
      %p21 = scmp.ge.s32.totalorder %s20, 4
      %s30 = sphi 0, %s32
      %s33 = sphi 0, %s30
      %s34 = sphi 0, %s33
      %s50 = sphi 0, %s34
      %s54 = sphi 0, %s54
      %s56 = sphi 0, %s54
      %s57 = sphi 0, %s56
      %s71 = sphi 0, %s57
      %s75 = sphi 0, %s75
      %s77 = sphi 0, %s75
      %s78 = sphi 0, %s77
      %s92 = sphi 0, %s78
      %s96 = sphi 0, %s96
      %s98 = sphi 0, %s96
      %s99 = sphi 0, %s98
      %s113 = sphi 0, %s99
      %s117 = sphi 0, %s117
      %s119 = sphi 0, %s117
      %s120 = sphi 0, %s119
      %s134 = sphi 0, %s120
      %s138 = sphi 0, %s138
      %s140 = sphi 0, %s138
      %s141 = sphi 0, %s140
      %s155 = sphi 0, %s141
      %s159 = sphi 0, %s159
      %s161 = sphi 0, %s159
      %s162 = sphi 0, %s161
      %s176 = sphi 0, %s162
      %s180 = sphi 0, %s180
      %s182 = sphi 0, %s180
      %s183 = sphi 0, %s182
      %s197 = sphi 0, %s183
      %s201 = sphi 0, %s201
      %s203 = sphi 0, %s201
      %s204 = sphi 0, %s203
      %s218 = sphi 0, %s204
      %s222 = sphi 0, %s222
      %s224 = sphi 0, %s222
      %s225 = sphi 0, %s224
      %s239 = sphi 0, %s225
      %s243 = sphi 0, %s243
      %s245 = sphi 0, %s243
      %s246 = sphi 0, %s245
      %s260 = sphi 0, %s246
      %s266 = sphi 0, %s268
      %s269 = sphi 0, %s266
      %s270 = sphi 0, %s269
      %s286 = sphi 0, %s270
    $region4: #{tpu_custom_call.1} parent=1 // loop_header_branch
      %23 = sbr.rel (%p21) target = $region8
    $region5: #{tpu_custom_call.1} parent=1 // loop_body
      %s25 = ssub.s32 %s20, 1
      %s26 = ssub.s32 %s20, 2
      %s27 = sadd.s32 %s20, 1
      %s28 = ssub.s32 %s20, %s27
      %p29 = scmp.eq.s32.totalorder %s28, 0
      %s31 = sadd.s32 %s30, 1
      %s32 = scalar_select %p29, %s30, %s31
      %p35 = pneg %p29
      %p36 = scmp.eq.s32.totalorder %s20, 1
      %p37 = por %p35, %p36
      %p38 = scmp.ne.s32.totalorder %s30, %s33
      %p39 = scmp.eq.s32.totalorder %s20, 0
      %p40 = por %p38, %p39
      %p41 = scmp.ne.s32.totalorder %s30, %s33
      %p42 = scmp.eq.s32.totalorder %s25, 1
      %p43 = por %p41, %p42
      %p44 = scmp.ne.s32.totalorder %s33, %s34
      %p45 = scmp.eq.s32.totalorder %s25, 0
      %p46 = por %p44, %p45
      %p47 = scmp.ne.s32.totalorder %s33, %s34
      %p48 = scmp.eq.s32.totalorder %s26, 1
      %p49 = por %p47, %p48
      %p51 = scmp.ne.s32.totalorder %s34, %s50
      %p52 = scmp.eq.s32.totalorder %s26, 0
      %p53 = por %p51, %p52
      %s55 = sadd.s32 %s54, 1
      %p58 = scmp.eq.s32.totalorder %s20, 1
      %p59 = scmp.ne.s32.totalorder %s54, %s56
      %p60 = scmp.eq.s32.totalorder %s20, 0
      %p61 = por %p59, %p60
      %p62 = scmp.ne.s32.totalorder %s54, %s56
      %p63 = scmp.eq.s32.totalorder %s25, 1
      %p64 = por %p62, %p63
      %p65 = scmp.ne.s32.totalorder %s56, %s57
      %p66 = scmp.eq.s32.totalorder %s25, 0
      %p67 = por %p65, %p66
      %p68 = scmp.ne.s32.totalorder %s56, %s57
      %p69 = scmp.eq.s32.totalorder %s26, 1
      %p70 = por %p68, %p69
      %p72 = scmp.ne.s32.totalorder %s57, %s71
      %p73 = scmp.eq.s32.totalorder %s26, 0
      %p74 = por %p72, %p73
      %s76 = sadd.s32 %s75, 1
      %p79 = scmp.eq.s32.totalorder %s20, 1
      %p80 = scmp.ne.s32.totalorder %s75, %s77
      %p81 = scmp.eq.s32.totalorder %s20, 0
      %p82 = por %p80, %p81
      %p83 = scmp.ne.s32.totalorder %s75, %s77
      %p84 = scmp.eq.s32.totalorder %s25, 1
      %p85 = por %p83, %p84
      %p86 = scmp.ne.s32.totalorder %s77, %s78
      %p87 = scmp.eq.s32.totalorder %s25, 0
      %p88 = por %p86, %p87
      %p89 = scmp.ne.s32.totalorder %s77, %s78
      %p90 = scmp.eq.s32.totalorder %s26, 1
      %p91 = por %p89, %p90
      %p93 = scmp.ne.s32.totalorder %s78, %s92
      %p94 = scmp.eq.s32.totalorder %s26, 0
      %p95 = por %p93, %p94
      %s97 = sadd.s32 %s96, 1
      %p100 = scmp.eq.s32.totalorder %s20, 1
      %p101 = scmp.ne.s32.totalorder %s96, %s98
      %p102 = scmp.eq.s32.totalorder %s20, 0
      %p103 = por %p101, %p102
      %p104 = scmp.ne.s32.totalorder %s96, %s98
      %p105 = scmp.eq.s32.totalorder %s25, 1
      %p106 = por %p104, %p105
      %p107 = scmp.ne.s32.totalorder %s98, %s99
      %p108 = scmp.eq.s32.totalorder %s25, 0
      %p109 = por %p107, %p108
      %p110 = scmp.ne.s32.totalorder %s98, %s99
      %p111 = scmp.eq.s32.totalorder %s26, 1
      %p112 = por %p110, %p111
      %p114 = scmp.ne.s32.totalorder %s99, %s113
      %p115 = scmp.eq.s32.totalorder %s26, 0
      %p116 = por %p114, %p115
      %s118 = sadd.s32 %s117, 1
      %p121 = scmp.eq.s32.totalorder %s20, 1
      %p122 = scmp.ne.s32.totalorder %s117, %s119
      %p123 = scmp.eq.s32.totalorder %s20, 0
      %p124 = por %p122, %p123
      %p125 = scmp.ne.s32.totalorder %s117, %s119
      %p126 = scmp.eq.s32.totalorder %s25, 1
      %p127 = por %p125, %p126
      %p128 = scmp.ne.s32.totalorder %s119, %s120
      %p129 = scmp.eq.s32.totalorder %s25, 0
      %p130 = por %p128, %p129
      %p131 = scmp.ne.s32.totalorder %s119, %s120
      %p132 = scmp.eq.s32.totalorder %s26, 1
      %p133 = por %p131, %p132
      %p135 = scmp.ne.s32.totalorder %s120, %s134
      %p136 = scmp.eq.s32.totalorder %s26, 0
      %p137 = por %p135, %p136
      %s139 = sadd.s32 %s138, 1
      %p142 = scmp.eq.s32.totalorder %s20, 1
      %p143 = scmp.ne.s32.totalorder %s138, %s140
      %p144 = scmp.eq.s32.totalorder %s20, 0
      %p145 = por %p143, %p144
      %p146 = scmp.ne.s32.totalorder %s138, %s140
      %p147 = scmp.eq.s32.totalorder %s25, 1
      %p148 = por %p146, %p147
      %p149 = scmp.ne.s32.totalorder %s140, %s141
      %p150 = scmp.eq.s32.totalorder %s25, 0
      %p151 = por %p149, %p150
      %p152 = scmp.ne.s32.totalorder %s140, %s141
      %p153 = scmp.eq.s32.totalorder %s26, 1
      %p154 = por %p152, %p153
      %p156 = scmp.ne.s32.totalorder %s141, %s155
      %p157 = scmp.eq.s32.totalorder %s26, 0
      %p158 = por %p156, %p157
      %s160 = sadd.s32 %s159, 1
      %p163 = scmp.eq.s32.totalorder %s20, 1
      %p164 = scmp.ne.s32.totalorder %s159, %s161
      %p165 = scmp.eq.s32.totalorder %s20, 0
      %p166 = por %p164, %p165
      %p167 = scmp.ne.s32.totalorder %s159, %s161
      %p168 = scmp.eq.s32.totalorder %s25, 1
      %p169 = por %p167, %p168
      %p170 = scmp.ne.s32.totalorder %s161, %s162
      %p171 = scmp.eq.s32.totalorder %s25, 0
      %p172 = por %p170, %p171
      %p173 = scmp.ne.s32.totalorder %s161, %s162
      %p174 = scmp.eq.s32.totalorder %s26, 1
      %p175 = por %p173, %p174
      %p177 = scmp.ne.s32.totalorder %s162, %s176
      %p178 = scmp.eq.s32.totalorder %s26, 0
      %p179 = por %p177, %p178
      %s181 = sadd.s32 %s180, 1
      %p184 = scmp.eq.s32.totalorder %s20, 1
      %p185 = scmp.ne.s32.totalorder %s180, %s182
      %p186 = scmp.eq.s32.totalorder %s20, 0
      %p187 = por %p185, %p186
      %p188 = scmp.ne.s32.totalorder %s180, %s182
      %p189 = scmp.eq.s32.totalorder %s25, 1
      %p190 = por %p188, %p189
      %p191 = scmp.ne.s32.totalorder %s182, %s183
      %p192 = scmp.eq.s32.totalorder %s25, 0
      %p193 = por %p191, %p192
      %p194 = scmp.ne.s32.totalorder %s182, %s183
      %p195 = scmp.eq.s32.totalorder %s26, 1
      %p196 = por %p194, %p195
      %p198 = scmp.ne.s32.totalorder %s183, %s197
      %p199 = scmp.eq.s32.totalorder %s26, 0
      %p200 = por %p198, %p199
      %s202 = sadd.s32 %s201, 1
      %p205 = scmp.eq.s32.totalorder %s20, 1
      %p206 = scmp.ne.s32.totalorder %s201, %s203
      %p207 = scmp.eq.s32.totalorder %s20, 0
      %p208 = por %p206, %p207
      %p209 = scmp.ne.s32.totalorder %s201, %s203
      %p210 = scmp.eq.s32.totalorder %s25, 1
      %p211 = por %p209, %p210
      %p212 = scmp.ne.s32.totalorder %s203, %s204
      %p213 = scmp.eq.s32.totalorder %s25, 0
      %p214 = por %p212, %p213
      %p215 = scmp.ne.s32.totalorder %s203, %s204
      %p216 = scmp.eq.s32.totalorder %s26, 1
      %p217 = por %p215, %p216
      %p219 = scmp.ne.s32.totalorder %s204, %s218
      %p220 = scmp.eq.s32.totalorder %s26, 0
      %p221 = por %p219, %p220
      %s223 = sadd.s32 %s222, 1
      %p226 = scmp.eq.s32.totalorder %s20, 1
      %p227 = scmp.ne.s32.totalorder %s222, %s224
      %p228 = scmp.eq.s32.totalorder %s20, 0
      %p229 = por %p227, %p228
      %p230 = scmp.ne.s32.totalorder %s222, %s224
      %p231 = scmp.eq.s32.totalorder %s25, 1
      %p232 = por %p230, %p231
      %p233 = scmp.ne.s32.totalorder %s224, %s225
      %p234 = scmp.eq.s32.totalorder %s25, 0
      %p235 = por %p233, %p234
      %p236 = scmp.ne.s32.totalorder %s224, %s225
      %p237 = scmp.eq.s32.totalorder %s26, 1
      %p238 = por %p236, %p237
      %p240 = scmp.ne.s32.totalorder %s225, %s239
      %p241 = scmp.eq.s32.totalorder %s26, 0
      %p242 = por %p240, %p241
      %s244 = sadd.s32 %s243, 1
      %p247 = scmp.eq.s32.totalorder %s20, 1
      %p248 = scmp.ne.s32.totalorder %s243, %s245
      %p249 = scmp.eq.s32.totalorder %s20, 0
      %p250 = por %p248, %p249
      %p251 = scmp.ne.s32.totalorder %s243, %s245
      %p252 = scmp.eq.s32.totalorder %s25, 1
      %p253 = por %p251, %p252
      %p254 = scmp.ne.s32.totalorder %s245, %s246
      %p255 = scmp.eq.s32.totalorder %s25, 0
      %p256 = por %p254, %p255
      %p257 = scmp.ne.s32.totalorder %s245, %s246
      %p258 = scmp.eq.s32.totalorder %s26, 1
      %p259 = por %p257, %p258
      %p261 = scmp.ne.s32.totalorder %s246, %s260
      %p262 = scmp.eq.s32.totalorder %s26, 0
      %p263 = por %p261, %p262
      %s264 = ssub.s32 %s20, %s27
      %p265 = scmp.eq.s32.totalorder %s264, 0
      %s267 = sadd.s32 %s266, 1
      %s268 = scalar_select %p265, %s266, %s267
      %p271 = pneg %p265
      %p272 = scmp.eq.s32.totalorder %s20, 1
      %p273 = por %p271, %p272
      %p274 = scmp.ne.s32.totalorder %s266, %s269
      %p275 = scmp.eq.s32.totalorder %s20, 0
      %p276 = por %p274, %p275
      %p277 = scmp.ne.s32.totalorder %s266, %s269
      %p278 = scmp.eq.s32.totalorder %s25, 1
      %p279 = por %p277, %p278
      %p280 = scmp.ne.s32.totalorder %s269, %s270
      %p281 = scmp.eq.s32.totalorder %s25, 0
      %p282 = por %p280, %p281
      %p283 = scmp.ne.s32.totalorder %s269, %s270
      %p284 = scmp.eq.s32.totalorder %s26, 1
      %p285 = por %p283, %p284
      %p287 = scmp.ne.s32.totalorder %s270, %s286
      %p288 = scmp.eq.s32.totalorder %s26, 0
      %p289 = por %p287, %p288
      %p290 = scmp.le.s32.totalorder 1, %s20
      %p291 = scmp.lt.s32.totalorder %s20, 3
      %p292 = pnand %p290, %p291
      %p293 = pneg %p292
      // Predicated region
      $region9: #{tpu_custom_call.1} parent=5 // pred_check
        _
      $region10: #{tpu_custom_call.1} parent=5 // pred_check_branch
        %295 = sbr.rel (%p292) target = $region12
      $region11: #{tpu_custom_call.1} parent=5 // pred_region
        %s296 = ssub.s32 %s20, 1
        // Predicated region
        $region13: #{tpu_custom_call.1} parent=11 // pred_check
          %p297 = pneg %p67
        $region14: #{tpu_custom_call.1} parent=11 // pred_check_branch
          %299 = sbr.rel (%p297) target = $region16
        $region15: #{tpu_custom_call.1} parent=11 // pred_region
          _
        $region16: #{tpu_custom_call.1} parent=11 // pred_fallthru
          _
        // Predicated region
        $region17: #{tpu_custom_call.1} parent=11 // pred_check
          %p300 = pneg %p88
        $region18: #{tpu_custom_call.1} parent=11 // pred_check_branch
          %302 = sbr.rel (%p300) target = $region20
        $region19: #{tpu_custom_call.1} parent=11 // pred_region
          _
        $region20: #{tpu_custom_call.1} parent=11 // pred_fallthru
          _
        // Predicated region
        $region21: #{tpu_custom_call.1} parent=11 // pred_check
          %p303 = pneg %p109
        $region22: #{tpu_custom_call.1} parent=11 // pred_check_branch
          %305 = sbr.rel (%p303) target = $region24
        $region23: #{tpu_custom_call.1} parent=11 // pred_region
          %307 = vsyncadd [#allocation3], 0
          %s308 = sshll.u32 %s3, 4
          %s309 = int_to_ptr.hbm [resolvable:$true] %s308
          %s310 = sshll.u32 [#allocation2], 4
          %s311 = int_to_ptr.vmem [resolvable:$true] %s310
          %316 = dma.hbm_to_vmem [thread:$0]  %s309, 1024, %s311, [#allocation3], 64, 64, 4
        $region24: #{tpu_custom_call.1} parent=11 // pred_fallthru
          _
        // Predicated region
        $region25: #{tpu_custom_call.1} parent=11 // pred_check
          %p317 = pneg %p130
        $region26: #{tpu_custom_call.1} parent=11 // pred_check_branch
          %319 = sbr.rel (%p317) target = $region28
        $region27: #{tpu_custom_call.1} parent=11 // pred_region
          _
        $region28: #{tpu_custom_call.1} parent=11 // pred_fallthru
          _
        // Predicated region
        $region29: #{tpu_custom_call.1} parent=11 // pred_check
          %p320 = pneg %p151
        $region30: #{tpu_custom_call.1} parent=11 // pred_check_branch
          %322 = sbr.rel (%p320) target = $region32
        $region31: #{tpu_custom_call.1} parent=11 // pred_region
          %324 = vsyncadd [#allocation5], 0
          %s325 = sshll.u32 %s5, 4
          %s326 = int_to_ptr.hbm [resolvable:$true] %s325
          %s327 = sshll.u32 [#allocation4], 4
          %s328 = int_to_ptr.vmem [resolvable:$true] %s327
          %333 = dma.hbm_to_vmem [thread:$0]  %s326, 1024, %s328, [#allocation5], 64, 64, 4
        $region32: #{tpu_custom_call.1} parent=11 // pred_fallthru
          _
        // Predicated region
        $region33: #{tpu_custom_call.1} parent=11 // pred_check
          %p334 = pneg %p172
        $region34: #{tpu_custom_call.1} parent=11 // pred_check_branch
          %336 = sbr.rel (%p334) target = $region36
        $region35: #{tpu_custom_call.1} parent=11 // pred_region
          _
        $region36: #{tpu_custom_call.1} parent=11 // pred_fallthru
          _
        // Predicated region
        $region37: #{tpu_custom_call.1} parent=11 // pred_check
          %p337 = pneg %p193
        $region38: #{tpu_custom_call.1} parent=11 // pred_check_branch
          %339 = sbr.rel (%p337) target = $region40
        $region39: #{tpu_custom_call.1} parent=11 // pred_region
          %341 = vsyncadd [#allocation5], 0
          %s342 = sshll.u32 %s7, 4
          %s343 = int_to_ptr.hbm [resolvable:$true] %s342
          %s344 = sshll.u32 [#allocation6], 4
          %s345 = int_to_ptr.vmem [resolvable:$true] %s344
          %350 = dma.hbm_to_vmem [thread:$0]  %s343, 1024, %s345, [#allocation5], 64, 64, 4
        $region40: #{tpu_custom_call.1} parent=11 // pred_fallthru
          _
        // Predicated region
        $region41: #{tpu_custom_call.1} parent=11 // pred_check
          %p351 = pneg %p214
        $region42: #{tpu_custom_call.1} parent=11 // pred_check_branch
          %353 = sbr.rel (%p351) target = $region44
        $region43: #{tpu_custom_call.1} parent=11 // pred_region
          _
        $region44: #{tpu_custom_call.1} parent=11 // pred_fallthru
          _
        // Predicated region
        $region45: #{tpu_custom_call.1} parent=11 // pred_check
          %p354 = pneg %p235
        $region46: #{tpu_custom_call.1} parent=11 // pred_check_branch
          %356 = sbr.rel (%p354) target = $region48
        $region47: #{tpu_custom_call.1} parent=11 // pred_region
          %358 = vsyncadd [#allocation8], 0
          %s359 = sshll.u32 %s9, 4
          %s360 = int_to_ptr.hbm [resolvable:$true] %s359
          %s361 = sshll.u32 [#allocation7], 4
          %s362 = int_to_ptr.vmem [resolvable:$true] %s361
          %367 = dma.hbm_to_vmem [thread:$0]  %s360, 1024, %s362, [#allocation8], 64, 64, 4
        $region48: #{tpu_custom_call.1} parent=11 // pred_fallthru
          _
        // Predicated region
        $region49: #{tpu_custom_call.1} parent=11 // pred_check
          %p368 = pneg %p256
        $region50: #{tpu_custom_call.1} parent=11 // pred_check_branch
          %370 = sbr.rel (%p368) target = $region52
        $region51: #{tpu_custom_call.1} parent=11 // pred_region
          _
        $region52: #{tpu_custom_call.1} parent=11 // pred_fallthru
          _
      $region12: #{tpu_custom_call.1} parent=5 // pred_fallthru
        _
      %p371 = scmp.lt.s32.totalorder %s20, 2
      // Predicated region
      $region53: #{tpu_custom_call.1} parent=5 // pred_check
        %p372 = pneg %p371
      $region54: #{tpu_custom_call.1} parent=5 // pred_check_branch
        %374 = sbr.rel (%p372) target = $region56
      $region55: #{tpu_custom_call.1} parent=5 // pred_region
        // Predicated region
        $region57: #{tpu_custom_call.1} parent=55 // pred_check
          %p375 = pneg %p40
        $region58: #{tpu_custom_call.1} parent=55 // pred_check_branch
          %377 = sbr.rel (%p375) target = $region60
        $region59: #{tpu_custom_call.1} parent=55 // pred_region
          %s378 = smul.u32 4, %s20
          %p379 = scmp.lt.s32.totalorder %s378, 7
          %s380 = scalar_select %p379, %s378, 7
          %s381 = smul.addr %s380, 4
          %s382 = scalar_lea.vmem %s0, %s381
          %s383 = smul.u32 4, %s20
        $region60: #{tpu_custom_call.1} parent=55 // pred_fallthru
          _
      $region56: #{tpu_custom_call.1} parent=5 // pred_fallthru
        _
      %p384 = scmp.le.s32.totalorder 1, %s20
      %p385 = scmp.lt.s32.totalorder %s20, 3
      %p386 = pnand %p384, %p385
      %p387 = pneg %p386
      // Predicated region
      $region61: #{tpu_custom_call.1} parent=5 // pred_check
        _
      $region62: #{tpu_custom_call.1} parent=5 // pred_check_branch
        %389 = sbr.rel (%p386) target = $region64
      $region63: #{tpu_custom_call.1} parent=5 // pred_region
        %s390 = ssub.s32 %s20, 1
        // Predicated region
        $region65: #{tpu_custom_call.1} parent=63 // pred_check
          %p391 = pneg %p109
        $region66: #{tpu_custom_call.1} parent=63 // pred_check_branch
          %393 = sbr.rel (%p391) target = $region68
        $region67: #{tpu_custom_call.1} parent=63 // pred_region
          %395 = dma.done [#allocation3], 1024
        $region68: #{tpu_custom_call.1} parent=63 // pred_fallthru
          _
        // Predicated region
        $region69: #{tpu_custom_call.1} parent=63 // pred_check
          %p396 = pneg %p151
        $region70: #{tpu_custom_call.1} parent=63 // pred_check_branch
          %398 = sbr.rel (%p396) target = $region72
        $region71: #{tpu_custom_call.1} parent=63 // pred_region
          %400 = dma.done [#allocation5], 1024
        $region72: #{tpu_custom_call.1} parent=63 // pred_fallthru
          _
        // Predicated region
        $region73: #{tpu_custom_call.1} parent=63 // pred_check
          %p401 = pneg %p193
        $region74: #{tpu_custom_call.1} parent=63 // pred_check_branch
          %403 = sbr.rel (%p401) target = $region76
        $region75: #{tpu_custom_call.1} parent=63 // pred_region
          %405 = dma.done [#allocation5], 1024
        $region76: #{tpu_custom_call.1} parent=63 // pred_fallthru
          _
        // Predicated region
        $region77: #{tpu_custom_call.1} parent=63 // pred_check
          %p406 = pneg %p235
        $region78: #{tpu_custom_call.1} parent=63 // pred_check_branch
          %408 = sbr.rel (%p406) target = $region80
        $region79: #{tpu_custom_call.1} parent=63 // pred_region
          %410 = dma.done [#allocation8], 1024
        $region80: #{tpu_custom_call.1} parent=63 // pred_fallthru
          _
        %s411 = smul.u32 4, %s25
        %p412 = scmp.lt.s32.totalorder %s411, 7
        %s413 = scalar_select %p412, %s411, 7
        %s414 = smul.addr %s413, 4
        %s415 = scalar_lea.vmem %s0, %s414
        %p416 = pneg %p46
        %p417 = pneg %p43
        %p418 = pneg %p67
        %p419 = pneg %p64
        %p420 = pneg %p88
        %p421 = pneg %p85
        %p422 = pneg %p109
        %p423 = pneg %p106
        %p424 = pneg %p130
        %p425 = pneg %p127
        %p426 = pneg %p151
        %p427 = pneg %p148
        %p428 = pneg %p172
        %p429 = pneg %p169
        %p430 = pneg %p193
        %p431 = pneg %p190
        %p432 = pneg %p214
        %p433 = pneg %p211
        %p434 = pneg %p235
        %p435 = pneg %p232
        %p436 = pneg %p256
        %p437 = pneg %p253
        %p438 = pneg %p282
        %p439 = pneg %p279
        %s440 = smul.u32 4, %s25
        %p441 = scmp.lt.s32.totalorder %s440, 7
        %s442 = scalar_select %p441, %s440, 7
        %s443 = smul.addr %s442, 8
        %s444 = scalar_lea.vmem %s11, %s443
        %s445 = smul.u32 4, %s25
        %p446 = scmp.lt.s32.totalorder %s445, 7
        %s447 = scalar_select %p446, %s445, 7
        %s448 = smul.addr %s447, 4
        %s449 = scalar_lea.vmem %s0, %s448
        %s450 = smul.u32 4, %s25
        %s451 = smul.u32 4, %s25
        %p452 = scmp.lt.s32.totalorder %s451, 7
        %s453 = scalar_select %p452, %s451, 7
        %s454 = smul.addr %s453, 8
        %s455 = scalar_lea.vmem %s11, %s454
        %s456 = smul.u32 4, %s25
        %v458 = vld [vmem:[%s449] sm:$0xf]
        %v459 = vld [vmem:[%s449 + $0x4] sm:$0xf]
        %v460 = vld [vmem:[%s449 + $0x8] sm:$0xf]
        %v461 = vld [vmem:[%s449 + $0xc] sm:$0xf]
        %v462 = vld [vmem:[%s1] sm:$0xf]
        %v463 = vld [vmem:[%s1 + $0x4] sm:$0xf]
        %v464 = vld [vmem:[%s1 + $0x8] sm:$0xf]
        %v465 = vld [vmem:[%s1 + $0xc] sm:$0xf]
        %v466 = vld [vmem:[%s2] sm:$0x1]
        %v468 = vperm.slane %v466, 0
        %v474 = vunpack.c.l.b16 %v458
        %v475 = vunpack.c.l.b16 %v459
        %v476 = vunpack.c.l.b16 %v460
        %v477 = vunpack.c.l.b16 %v461
        %v478 = vpack.c.b16 %v475, %v474
        %v479 = vpack.c.b16 %v477, %v476
        %v484 = vunpack.c.l.b16 %v462
        %v485 = vunpack.c.l.b16 %v463
        %v486 = vunpack.c.l.b16 %v464
        %v487 = vunpack.c.l.b16 %v465
        %v488 = vpack.c.b16 %v485, %v484
        %v489 = vpack.c.b16 %v487, %v486
        %vm492 = vcmask 261120
        %v494 = vsel %vm492, %v478, 0
        %v497 = vsel %vm492, %v479, 0
        %499 = vmatpush.bf16.msra.mxu0 0
        %500 = vmatpush.bf16.msra.mxu0 0
        %501 = vmatpush.bf16.msra.mxu0 0
        %502 = vmatpush.bf16.msra.mxu0 0
        %503 = vmatpush.bf16.msra.mxu0 0
        %504 = vmatpush.bf16.msra.mxu0 0
        %505 = vmatpush.bf16.msra.mxu0 %v489
        %506 = vmatpush.bf16.msra.mxu0 %v488
        %507 = vmatmul.bf16.gmra.mxu0 %v494
        %v508 = vpop.f32.mrf.mxu0
        %v509 = vadd.f32 %v468, %v508
        %v510 = vpop.f32.mrf.mxu0
        %v511 = vadd.f32 %v468, %v510
        %512 = vmatmul.bf16.gmra.mxu0 %v497
        %v513 = vpop.f32.mrf.mxu0
        %v514 = vadd.f32 %v468, %v513
        %v515 = vpop.f32.mrf.mxu0
        %v516 = vadd.f32 %v468, %v515
        %517 = vdwg.mxu0
        %v518 = vmax.f32 %v509, 0.0
        %v519 = vmax.f32 %v511, 0.0
        %v520 = vmax.f32 %v514, 0.0
        %v521 = vmax.f32 %v516, 0.0
        %v522 = vpack.c.bf16 %v519, %v518
        %v523 = vpack.c.bf16 %v521, %v520
        %v524 = vld [vmem:[#allocation2] sm:$0xf]
        %v525 = vld [vmem:[#allocation2 + $0x4] sm:$0xf]
        %v526 = vld [vmem:[#allocation2 + $0x8] sm:$0xf]
        %v527 = vld [vmem:[#allocation2 + $0xc] sm:$0xf]
        %v528 = vld [vmem:[#allocation2 + $0x10] sm:$0xf]
        %v529 = vld [vmem:[#allocation2 + $0x14] sm:$0xf]
        %v530 = vld [vmem:[#allocation2 + $0x18] sm:$0xf]
        %v531 = vld [vmem:[#allocation2 + $0x1c] sm:$0xf]
        %v532 = vld [vmem:[#allocation2 + $0x20] sm:$0xf]
        %v533 = vld [vmem:[#allocation2 + $0x24] sm:$0xf]
        %v534 = vld [vmem:[#allocation2 + $0x28] sm:$0xf]
        %v535 = vld [vmem:[#allocation2 + $0x2c] sm:$0xf]
        %v536 = vld [vmem:[#allocation2 + $0x30] sm:$0xf]
        %v537 = vld [vmem:[#allocation2 + $0x34] sm:$0xf]
        %v538 = vld [vmem:[#allocation2 + $0x38] sm:$0xf]
        %v539 = vld [vmem:[#allocation2 + $0x3c] sm:$0xf]
        %v540 = vld [vmem:[%s4] sm:$0x1]
        %v542 = vperm.slane %v540, 0
        %v560 = vunpack.c.l.b16 %v524
        %v561 = vunpack.c.l.b16 %v525
        %v562 = vunpack.c.l.b16 %v526
        %v563 = vunpack.c.l.b16 %v527
        %v564 = vunpack.c.l.b16 %v528
        %v565 = vunpack.c.l.b16 %v529
        %v566 = vunpack.c.l.b16 %v530
        %v567 = vunpack.c.l.b16 %v531
        %v568 = vunpack.c.l.b16 %v532
        %v569 = vunpack.c.l.b16 %v533
        %v570 = vunpack.c.l.b16 %v534
        %v571 = vunpack.c.l.b16 %v535
        %v572 = vunpack.c.l.b16 %v536
        %v573 = vunpack.c.l.b16 %v537
        %v574 = vunpack.c.l.b16 %v538
        %v575 = vunpack.c.l.b16 %v539
        %v576 = vpack.c.b16 %v561, %v560
        %v577 = vpack.c.b16 %v563, %v562
        %v578 = vpack.c.b16 %v565, %v564
        %v579 = vpack.c.b16 %v567, %v566
        %v580 = vpack.c.b16 %v569, %v568
        %v581 = vpack.c.b16 %v571, %v570
        %v582 = vpack.c.b16 %v573, %v572
        %v583 = vpack.c.b16 %v575, %v574
        %592 = vmatpush.bf16.msra.mxu0 %v583
        %593 = vmatpush.bf16.msra.mxu0 %v582
        %594 = vmatpush.bf16.msra.mxu0 %v581
        %595 = vmatpush.bf16.msra.mxu0 %v580
        %596 = vmatpush.bf16.msra.mxu0 %v579
        %597 = vmatpush.bf16.msra.mxu0 %v578
        %598 = vmatpush.bf16.msra.mxu0 %v577
        %599 = vmatpush.bf16.msra.mxu0 %v576
        %600 = vmatmul.bf16.gmra.mxu0 %v522
        %v601 = vpop.f32.mrf.mxu0
        %v602 = vadd.f32 %v542, %v601
        %v603 = vpop.f32.mrf.mxu0
        %v604 = vadd.f32 %v542, %v603
        %605 = vmatmul.bf16.gmra.mxu0 %v523
        %v606 = vpop.f32.mrf.mxu0
        %v607 = vadd.f32 %v542, %v606
        %v608 = vpop.f32.mrf.mxu0
        %v609 = vadd.f32 %v542, %v608
        %610 = vdwg.mxu0
        %v611 = vmax.f32 %v602, 0.0
        %v612 = vmax.f32 %v604, 0.0
        %v613 = vmax.f32 %v607, 0.0
        %v614 = vmax.f32 %v609, 0.0
        %v615 = vpack.c.bf16 %v612, %v611
        %v616 = vpack.c.bf16 %v614, %v613
        %v617 = vld [vmem:[#allocation4] sm:$0xf]
        %v618 = vld [vmem:[#allocation4 + $0x4] sm:$0xf]
        %v619 = vld [vmem:[#allocation4 + $0x8] sm:$0xf]
        %v620 = vld [vmem:[#allocation4 + $0xc] sm:$0xf]
        %v621 = vld [vmem:[#allocation4 + $0x10] sm:$0xf]
        %v622 = vld [vmem:[#allocation4 + $0x14] sm:$0xf]
        %v623 = vld [vmem:[#allocation4 + $0x18] sm:$0xf]
        %v624 = vld [vmem:[#allocation4 + $0x1c] sm:$0xf]
        %v625 = vld [vmem:[#allocation4 + $0x20] sm:$0xf]
        %v626 = vld [vmem:[#allocation4 + $0x24] sm:$0xf]
        %v627 = vld [vmem:[#allocation4 + $0x28] sm:$0xf]
        %v628 = vld [vmem:[#allocation4 + $0x2c] sm:$0xf]
        %v629 = vld [vmem:[#allocation4 + $0x30] sm:$0xf]
        %v630 = vld [vmem:[#allocation4 + $0x34] sm:$0xf]
        %v631 = vld [vmem:[#allocation4 + $0x38] sm:$0xf]
        %v632 = vld [vmem:[#allocation4 + $0x3c] sm:$0xf]
        %v633 = vld [vmem:[%s6] sm:$0x1]
        %v635 = vperm.slane %v633, 0
        %v653 = vunpack.c.l.b16 %v617
        %v654 = vunpack.c.l.b16 %v618
        %v655 = vunpack.c.l.b16 %v619
        %v656 = vunpack.c.l.b16 %v620
        %v657 = vunpack.c.l.b16 %v621
        %v658 = vunpack.c.l.b16 %v622
        %v659 = vunpack.c.l.b16 %v623
        %v660 = vunpack.c.l.b16 %v624
        %v661 = vunpack.c.l.b16 %v625
        %v662 = vunpack.c.l.b16 %v626
        %v663 = vunpack.c.l.b16 %v627
        %v664 = vunpack.c.l.b16 %v628
        %v665 = vunpack.c.l.b16 %v629
        %v666 = vunpack.c.l.b16 %v630
        %v667 = vunpack.c.l.b16 %v631
        %v668 = vunpack.c.l.b16 %v632
        %v669 = vpack.c.b16 %v654, %v653
        %v670 = vpack.c.b16 %v656, %v655
        %v671 = vpack.c.b16 %v658, %v657
        %v672 = vpack.c.b16 %v660, %v659
        %v673 = vpack.c.b16 %v662, %v661
        %v674 = vpack.c.b16 %v664, %v663
        %v675 = vpack.c.b16 %v666, %v665
        %v676 = vpack.c.b16 %v668, %v667
        %685 = vmatpush.bf16.msra.mxu0 %v676
        %686 = vmatpush.bf16.msra.mxu0 %v675
        %687 = vmatpush.bf16.msra.mxu0 %v674
        %688 = vmatpush.bf16.msra.mxu0 %v673
        %689 = vmatpush.bf16.msra.mxu0 %v672
        %690 = vmatpush.bf16.msra.mxu0 %v671
        %691 = vmatpush.bf16.msra.mxu0 %v670
        %692 = vmatpush.bf16.msra.mxu0 %v669
        %693 = vmatmul.bf16.gmra.mxu0 %v615
        %v694 = vpop.f32.mrf.mxu0
        %v695 = vadd.f32 %v635, %v694
        %v696 = vpop.f32.mrf.mxu0
        %v697 = vadd.f32 %v635, %v696
        %698 = vmatmul.bf16.gmra.mxu0 %v616
        %v699 = vpop.f32.mrf.mxu0
        %v700 = vadd.f32 %v635, %v699
        %v701 = vpop.f32.mrf.mxu0
        %v702 = vadd.f32 %v635, %v701
        %703 = vdwg.mxu0
        %v704 = vmax.f32 %v695, 0.0
        %v705 = vmax.f32 %v697, 0.0
        %v706 = vmax.f32 %v700, 0.0
        %v707 = vmax.f32 %v702, 0.0
        %v708 = vpack.c.bf16 %v705, %v704
        %v709 = vpack.c.bf16 %v707, %v706
        %v710 = vld [vmem:[#allocation6] sm:$0xf]
        %v711 = vld [vmem:[#allocation6 + $0x4] sm:$0xf]
        %v712 = vld [vmem:[#allocation6 + $0x8] sm:$0xf]
        %v713 = vld [vmem:[#allocation6 + $0xc] sm:$0xf]
        %v714 = vld [vmem:[#allocation6 + $0x10] sm:$0xf]
        %v715 = vld [vmem:[#allocation6 + $0x14] sm:$0xf]
        %v716 = vld [vmem:[#allocation6 + $0x18] sm:$0xf]
        %v717 = vld [vmem:[#allocation6 + $0x1c] sm:$0xf]
        %v718 = vld [vmem:[#allocation6 + $0x20] sm:$0xf]
        %v719 = vld [vmem:[#allocation6 + $0x24] sm:$0xf]
        %v720 = vld [vmem:[#allocation6 + $0x28] sm:$0xf]
        %v721 = vld [vmem:[#allocation6 + $0x2c] sm:$0xf]
        %v722 = vld [vmem:[#allocation6 + $0x30] sm:$0xf]
        %v723 = vld [vmem:[#allocation6 + $0x34] sm:$0xf]
        %v724 = vld [vmem:[#allocation6 + $0x38] sm:$0xf]
        %v725 = vld [vmem:[#allocation6 + $0x3c] sm:$0xf]
        %v726 = vld [vmem:[%s8] sm:$0x1]
        %v728 = vperm.slane %v726, 0
        %v746 = vunpack.c.l.b16 %v710
        %v747 = vunpack.c.l.b16 %v711
        %v748 = vunpack.c.l.b16 %v712
        %v749 = vunpack.c.l.b16 %v713
        %v750 = vunpack.c.l.b16 %v714
        %v751 = vunpack.c.l.b16 %v715
        %v752 = vunpack.c.l.b16 %v716
        %v753 = vunpack.c.l.b16 %v717
        %v754 = vunpack.c.l.b16 %v718
        %v755 = vunpack.c.l.b16 %v719
        %v756 = vunpack.c.l.b16 %v720
        %v757 = vunpack.c.l.b16 %v721
        %v758 = vunpack.c.l.b16 %v722
        %v759 = vunpack.c.l.b16 %v723
        %v760 = vunpack.c.l.b16 %v724
        %v761 = vunpack.c.l.b16 %v725
        %v762 = vpack.c.b16 %v747, %v746
        %v763 = vpack.c.b16 %v749, %v748
        %v764 = vpack.c.b16 %v751, %v750
        %v765 = vpack.c.b16 %v753, %v752
        %v766 = vpack.c.b16 %v755, %v754
        %v767 = vpack.c.b16 %v757, %v756
        %v768 = vpack.c.b16 %v759, %v758
        %v769 = vpack.c.b16 %v761, %v760
        %778 = vmatpush.bf16.msra.mxu0 %v769
        %779 = vmatpush.bf16.msra.mxu0 %v768
        %780 = vmatpush.bf16.msra.mxu0 %v767
        %781 = vmatpush.bf16.msra.mxu0 %v766
        %782 = vmatpush.bf16.msra.mxu0 %v765
        %783 = vmatpush.bf16.msra.mxu0 %v764
        %784 = vmatpush.bf16.msra.mxu0 %v763
        %785 = vmatpush.bf16.msra.mxu0 %v762
        %786 = vmatmul.bf16.gmra.mxu0 %v708
        %v787 = vpop.f32.mrf.mxu0
        %v788 = vadd.f32 %v728, %v787
        %v789 = vpop.f32.mrf.mxu0
        %v790 = vadd.f32 %v728, %v789
        %791 = vmatmul.bf16.gmra.mxu0 %v709
        %v792 = vpop.f32.mrf.mxu0
        %v793 = vadd.f32 %v728, %v792
        %v794 = vpop.f32.mrf.mxu0
        %v795 = vadd.f32 %v728, %v794
        %796 = vdwg.mxu0
        %v797 = vmax.f32 %v788, 0.0
        %v798 = vmax.f32 %v790, 0.0
        %v799 = vmax.f32 %v793, 0.0
        %v800 = vmax.f32 %v795, 0.0
        %v801 = vpack.c.bf16 %v798, %v797
        %v802 = vpack.c.bf16 %v800, %v799
        %v803 = vld [vmem:[#allocation7] sm:$0xf]
        %v804 = vld [vmem:[#allocation7 + $0x4] sm:$0xf]
        %v805 = vld [vmem:[#allocation7 + $0x8] sm:$0xf]
        %v806 = vld [vmem:[#allocation7 + $0xc] sm:$0xf]
        %v807 = vld [vmem:[#allocation7 + $0x10] sm:$0xf]
        %v808 = vld [vmem:[#allocation7 + $0x14] sm:$0xf]
        %v809 = vld [vmem:[#allocation7 + $0x18] sm:$0xf]
        %v810 = vld [vmem:[#allocation7 + $0x1c] sm:$0xf]
        %v811 = vld [vmem:[#allocation7 + $0x20] sm:$0xf]
        %v812 = vld [vmem:[#allocation7 + $0x24] sm:$0xf]
        %v813 = vld [vmem:[#allocation7 + $0x28] sm:$0xf]
        %v814 = vld [vmem:[#allocation7 + $0x2c] sm:$0xf]
        %v815 = vld [vmem:[#allocation7 + $0x30] sm:$0xf]
        %v816 = vld [vmem:[#allocation7 + $0x34] sm:$0xf]
        %v817 = vld [vmem:[#allocation7 + $0x38] sm:$0xf]
        %v818 = vld [vmem:[#allocation7 + $0x3c] sm:$0xf]
        %v819 = vld [vmem:[%s10] sm:$0x1]
        %v821 = vperm.slane %v819, 0
        %v839 = vunpack.c.l.b16 %v803
        %v840 = vunpack.c.l.b16 %v804
        %v841 = vunpack.c.l.b16 %v805
        %v842 = vunpack.c.l.b16 %v806
        %v843 = vunpack.c.l.b16 %v807
        %v844 = vunpack.c.l.b16 %v808
        %v845 = vunpack.c.l.b16 %v809
        %v846 = vunpack.c.l.b16 %v810
        %v847 = vunpack.c.l.b16 %v811
        %v848 = vunpack.c.l.b16 %v812
        %v849 = vunpack.c.l.b16 %v813
        %v850 = vunpack.c.l.b16 %v814
        %v851 = vunpack.c.l.b16 %v815
        %v852 = vunpack.c.l.b16 %v816
        %v853 = vunpack.c.l.b16 %v817
        %v854 = vunpack.c.l.b16 %v818
        %v855 = vpack.c.b16 %v840, %v839
        %v856 = vpack.c.b16 %v842, %v841
        %v857 = vpack.c.b16 %v844, %v843
        %v858 = vpack.c.b16 %v846, %v845
        %v859 = vpack.c.b16 %v848, %v847
        %v860 = vpack.c.b16 %v850, %v849
        %v861 = vpack.c.b16 %v852, %v851
        %v862 = vpack.c.b16 %v854, %v853
        %871 = vmatpush.bf16.msra.mxu0 %v862
        %872 = vmatpush.bf16.msra.mxu0 %v861
        %873 = vmatpush.bf16.msra.mxu0 %v860
        %874 = vmatpush.bf16.msra.mxu0 %v859
        %875 = vmatpush.bf16.msra.mxu0 %v858
        %876 = vmatpush.bf16.msra.mxu0 %v857
        %877 = vmatpush.bf16.msra.mxu0 %v856
        %878 = vmatpush.bf16.msra.mxu0 %v855
        %879 = vmatmul.bf16.gmra.mxu0 %v801
        %v880 = vpop.f32.mrf.mxu0
        %v881 = vadd.f32 %v821, %v880
        %v882 = vpop.f32.mrf.mxu0
        %v883 = vadd.f32 %v821, %v882
        %884 = vmatmul.bf16.gmra.mxu0 %v802
        %v885 = vpop.f32.mrf.mxu0
        %v886 = vadd.f32 %v821, %v885
        %v887 = vpop.f32.mrf.mxu0
        %v888 = vadd.f32 %v821, %v887
        %889 = vdwg.mxu0
        %vm890 = vcmask 7168
        %891 = vst.msk [vmem:[%s455] sm:$0xff] %vm890, %v881
        %892 = vst.msk [vmem:[%s455 + $0x8] sm:$0xff] %vm890, %v883
        %893 = vst.msk [vmem:[%s455 + $0x10] sm:$0xff] %vm890, %v886
        %894 = vst.msk [vmem:[%s455 + $0x18] sm:$0xff] %vm890, %v888
        %s895 = smul.u32 4, %s25
        %p896 = scmp.lt.s32.totalorder %s895, 7
        %s897 = scalar_select %p896, %s895, 7
        %s898 = smul.addr %s897, 8
        %s899 = scalar_lea.vmem %s11, %s898
        // Predicated region
        $region81: #{tpu_custom_call.1} parent=63 // pred_check
          %p900 = pneg %p279
        $region82: #{tpu_custom_call.1} parent=63 // pred_check_branch
          %902 = sbr.rel (%p900) target = $region84
        $region83: #{tpu_custom_call.1} parent=63 // pred_region
          %s903 = smul.u32 4, %s25
        $region84: #{tpu_custom_call.1} parent=63 // pred_fallthru
          _
      $region64: #{tpu_custom_call.1} parent=5 // pred_fallthru
        _
      %p904 = scmp.le.s32.totalorder 2, %s20
      // Predicated region
      $region85: #{tpu_custom_call.1} parent=5 // pred_check
        %p905 = pneg %p904
      $region86: #{tpu_custom_call.1} parent=5 // pred_check_branch
        %907 = sbr.rel (%p905) target = $region88
      $region87: #{tpu_custom_call.1} parent=5 // pred_region
        %s908 = ssub.s32 %s20, 2
        // Predicated region
        $region89: #{tpu_custom_call.1} parent=87 // pred_check
          %p909 = pneg %p285
        $region90: #{tpu_custom_call.1} parent=87 // pred_check_branch
          %911 = sbr.rel (%p909) target = $region92
        $region91: #{tpu_custom_call.1} parent=87 // pred_region
          %s912 = smul.u32 4, %s26
          %p913 = scmp.lt.s32.totalorder %s912, 7
          %s914 = scalar_select %p913, %s912, 7
          %s915 = smul.addr %s914, 8
          %s916 = scalar_lea.vmem %s11, %s915
        $region92: #{tpu_custom_call.1} parent=87 // pred_fallthru
          _
      $region88: #{tpu_custom_call.1} parent=5 // pred_fallthru
        _
    $region6: #{tpu_custom_call.1} parent=1 // loop_footer
      %s24 = sadd.s32 1, %s20
    $region7: #{tpu_custom_call.1} parent=1 // loop_footer_branch
      %19 = sbr.rel target = $region3
    $region8: #{tpu_custom_call.1} parent=1 // loop_exit
      _
    %917 = vsyncpa [#allocation3], 1
    %s918 = scalar_lea.sflag [#allocation3], 1
    %919 = vsyncpa %s918, 1
    %920 = vsyncpa [#allocation5], 1
    %921 = vsyncpa [#allocation8], 1

</llo_original>
